<compile_context>
chip_gen: v5e
topology: v5e:2x2
jax: 0.10.0
libtpu: 0.0.40
codegen_flags: <defaults>
</compile_context>

<pallas_src>
import functools

import jax
import jax.numpy as jnp
from jax.experimental import pallas as pl
from jax.experimental.pallas import tpu as pltpu


# --------------------------------------------------------------------------- #
# Kernel
# --------------------------------------------------------------------------- #
def _ae_kernel(xT_ref,
               w1_ref, b1_ref, w2_ref, b2_ref,
               w3_ref, b3_ref, w4_ref, b4_ref,
               codeT_ref, outT_ref):
    """One [feature, tb] batch tile of the autoencoder forward (transposed)."""

    def layer(w_ref, b_ref, act_bf16):
        # [out, in] bf16 @ [in, tb] bf16 on the MXU, f32 accumulation;
        # bias-add stays f32 (v5e-safe elementwise path).
        return jnp.dot(w_ref[...], act_bf16,
                       preferred_element_type=jnp.float32) + b_ref[...]

    # ---- encoder ----
    h = jnp.maximum(layer(w1_ref, b1_ref, xT_ref[...]), 0.0)            # [H, tb] f32
    h = h.astype(jnp.bfloat16)                                           # halve live footprint
    code = jnp.maximum(layer(w2_ref, b2_ref, h), 0.0)                    # [C, tb] f32
    codeT_ref[...] = code.astype(codeT_ref.dtype)                        # code_activation=True

    # ---- decoder ----
    d = jnp.maximum(layer(w3_ref, b3_ref, code.astype(jnp.bfloat16)), 0.0)  # [H, tb] f32
    d = d.astype(jnp.bfloat16)
    outT_ref[...] = layer(w4_ref, b4_ref, d).astype(outT_ref.dtype)         # [D, tb]


# --------------------------------------------------------------------------- #
# VMEM budgeting / tile selection
# --------------------------------------------------------------------------- #
def _vmem_limit_bytes():
    """~75% of this generation's physical VMEM (96 MiB v5e/v6e, 48 MiB v7x)."""
    try:
        cap = pltpu.get_tpu_info().vmem_capacity_bytes
    except Exception:
        cap = 64 * 1024 * 1024            # conservative fallback: v7x per-TC VMEM
    return int(cap * 3 // 4)


def _vmem_need_bytes(tb, D, H, C):
    """Explicit residency + double-buffer accounting for one batch tile."""
    w_res = 2 * 2 * (D * H + C * H)       # bf16 weights, single-buffered residents
    b_res = 4 * (2 * H + C + D)           # f32 biases, residents
    x_stream = 2 * (D * tb * 2)           # bf16 x tile, double-buffered
    out_stream = 2 * ((C + D) * tb * 4)   # f32 code/out tiles, double-buffered
    live = tb * (12 * H + 8 * C + 8 * D)  # in-kernel f32 + bf16 activations (generous)
    return w_res + b_res + x_stream + out_stream + live + (1 << 20)


def _choose_batch_tile(B, D, H, C, budget):
    """Largest lane-aligned (multiple-of-128) tile that fits VMEM while
    keeping >= 2 grid steps (megacore sharding on v7x + pipelining)."""
    if B <= 128:
        return B                          # single full-batch block (lane dim == full dim)
    tb = 128
    for cand in (256, 512, 1024, 2048):
        if cand * 2 > B:                  # would collapse the grid to one step
            break
        if _vmem_need_bytes(cand, D, H, C) > budget:
            break
        tb = cand
    return tb


# --------------------------------------------------------------------------- #
# Wrapper
# --------------------------------------------------------------------------- #
def deep_autoencoder(x, params, *, single_buffer_residents=True):
    """x: [B, input_dim] f32.  Returns (code [B, code_dim], out [B, input_dim])."""
    B, D = x.shape
    H = params["w1"].shape[0]             # weights stored PyTorch-style [out, in]
    C = params["w2"].shape[0]

    vmem_limit = _vmem_limit_bytes()
    tb = _choose_batch_tile(B, D, H, C, vmem_limit)
    n_blocks = pl.cdiv(B, tb)
    Bp = n_blocks * tb

    # Lane-dense layout: batch on the 128-lane axis.  One fused wrapper-side
    # layout copy (transpose + bf16 downcast) -- halves streamed bytes and
    # makes every kernel store unmasked.
    xT = x.T.astype(jnp.bfloat16)                          # [D, B] bf16
    if Bp != B:                                            # ragged tail only
        xT = jnp.pad(xT, ((0, 0), (0, Bp - B)))

    resident_kwargs = (
        {"pipeline_mode": pl.Buffered(1)} if single_buffer_residents else {}
    )

    def resident(shape):
        # Full-array block, constant index_map -> DMA'd once, lives in VMEM
        # for the whole grid; Buffered(1) keeps it single-buffered.
        return pl.BlockSpec(shape, lambda i: (0, 0), **resident_kwargs)

    in_specs = [
        pl.BlockSpec((D, tb), lambda i: (0, i)),           # xT: streamed batch tiles
        resident((H, D)), resident((H, 1)),                # w1, b1
        resident((C, H)), resident((C, 1)),                # w2, b2
        resident((H, C)), resident((H, 1)),                # w3, b3
        resident((D, H)), resident((D, 1)),                # w4, b4
    ]
    out_specs = (
        pl.BlockSpec((C, tb), lambda i: (0, i)),           # code^T
        pl.BlockSpec((D, tb), lambda i: (0, i)),           # out^T
    )

    codeT, outT = pl.pallas_call(
        _ae_kernel,
        out_shape=(
            jax.ShapeDtypeStruct((C, Bp), jnp.float32),
            jax.ShapeDtypeStruct((D, Bp), jnp.float32),
        ),
        grid=(n_blocks,),
        in_specs=in_specs,
        out_specs=out_specs,
        compiler_params=pltpu.CompilerParams(
            dimension_semantics=("parallel",),             # batch tiles independent
            vmem_limit_bytes=vmem_limit,
        ),
    )(
        xT,
        params["w1"], params["b1"],
        params["w2"], params["b2"],
        params["w3"], params["b3"],
        params["w4"], params["b4"],
    )

    # Transpose back in the wrapper (layout plumbing only).
    return codeT[:, :B].T, outT[:, :B].T


# --------------------------------------------------------------------------- #
# Params / reference
# --------------------------------------------------------------------------- #
def init_params(key, input_dim, hidden_dim, code_dim):
    """PyTorch-style Linear init.  Weights kept in native [out, in] order as
    bf16 (MXU operands); biases as [out, 1] float32."""
    ks = jax.random.split(key, 8)

    def lin(kw, kb, fan_in, fan_out):
        bound = 1.0 / jnp.sqrt(jnp.float32(fan_in))
        w = jax.random.uniform(kw, (fan_out, fan_in), jnp.float32, -bound, bound)
        b = jax.random.uniform(kb, (fan_out, 1), jnp.float32, -bound, bound)
        return w.astype(jnp.bfloat16), b

    w1, b1 = lin(ks[0], ks[1], input_dim, hidden_dim)
    w2, b2 = lin(ks[2], ks[3], hidden_dim, code_dim)
    w3, b3 = lin(ks[4], ks[5], code_dim, hidden_dim)
    w4, b4 = lin(ks[6], ks[7], hidden_dim, input_dim)
    return {"w1": w1, "b1": b1, "w2": w2, "b2": b2,
            "w3": w3, "b3": b3, "w4": w4, "b4": b4}


def _reference(x, p):
    """Pure-JAX reference with the same numerics (bf16 dot operands, f32 acc,
    bf16 re-cast of activations between layers)."""
    def lin(a_bf16, w, b):
        return jnp.dot(a_bf16, w.T, preferred_element_type=jnp.float32) + b.reshape(1, -1)

    h = jnp.maximum(lin(x.astype(jnp.bfloat16), p["w1"], p["b1"]), 0.0)
    code = jnp.maximum(lin(h.astype(jnp.bfloat16), p["w2"], p["b2"]), 0.0)
    d = jnp.maximum(lin(code.astype(jnp.bfloat16), p["w3"], p["b3"]), 0.0)
    out = lin(d.astype(jnp.bfloat16), p["w4"], p["b4"])
    return code, out


# --------------------------------------------------------------------------- #
# Main
# --------------------------------------------------------------------------- #
if __name__ == "__main__":
    input_dim, hidden_dim, code_dim = 16, 32, 8
    batch = 256                               # -> 2 batch tiles of 128: pipelined, both v7x TCs busy

    key = jax.random.PRNGKey(0)
    kx, kp = jax.random.split(key)
    x = jax.random.normal(kx, (batch, input_dim), jnp.float32)
    params = init_params(kp, input_dim, hidden_dim, code_dim)

    def run(single_buffer):
        fwd = jax.jit(functools.partial(
            deep_autoencoder, single_buffer_residents=single_buffer))
        code, out = fwd(x, params)
        jax.block_until_ready((code, out))
        return code, out

    try:
        code, out = run(True)
    except Exception:
        # This jax build rejected pipeline_mode=pl.Buffered(1); fall back to
        # default double-buffered residents (identical semantics).
        code, out = run(False)

    code_ref, out_ref = _reference(x, params)
    assert code.shape == (batch, code_dim) and out.shape == (batch, input_dim)
    assert jnp.allclose(code, code_ref, atol=5e-3, rtol=5e-3), \
        float(jnp.abs(code - code_ref).max())
    assert jnp.allclose(out, out_ref, atol=5e-3, rtol=5e-3), \
        float(jnp.abs(out - out_ref).max())

    print("KERNEL_OK")
</pallas_src>

<mosaic_0001>
module attributes {stable_mosaic.version = 11 : i64} {
  func.func @_ae_kernel(%arg0: i32, %arg1: memref<16x128xbf16, #tpu.memory_space<vmem>>, %arg2: memref<32x16xbf16, #tpu.memory_space<vmem>>, %arg3: memref<32x1xf32, #tpu.memory_space<vmem>>, %arg4: memref<8x32xbf16, #tpu.memory_space<vmem>>, %arg5: memref<8x1xf32, #tpu.memory_space<vmem>>, %arg6: memref<32x8xbf16, #tpu.memory_space<vmem>>, %arg7: memref<32x1xf32, #tpu.memory_space<vmem>>, %arg8: memref<16x32xbf16, #tpu.memory_space<vmem>>, %arg9: memref<16x1xf32, #tpu.memory_space<vmem>>, %arg10: memref<8x128xf32, #tpu.memory_space<vmem>>, %arg11: memref<16x128xf32, #tpu.memory_space<vmem>>) attributes {dimension_semantics = [#tpu.dimension_semantics<parallel>], iteration_bounds = array<i64: 2>, scalar_prefetch = 0 : i64, scratch_operands = 0 : i64, tpu.core_type = #tpu.core_type<tc>, window_params = [{transform_indices = @transform_0, window_bounds = array<i64: 16, 128>}, {pipeline_mode = #tpu.pipeline_mode<synchronous>, transform_indices = @transform_1, window_bounds = array<i64: 32, 16>}, {pipeline_mode = #tpu.pipeline_mode<synchronous>, transform_indices = @transform_2, window_bounds = array<i64: 32, 1>}, {pipeline_mode = #tpu.pipeline_mode<synchronous>, transform_indices = @transform_3, window_bounds = array<i64: 8, 32>}, {pipeline_mode = #tpu.pipeline_mode<synchronous>, transform_indices = @transform_4, window_bounds = array<i64: 8, 1>}, {pipeline_mode = #tpu.pipeline_mode<synchronous>, transform_indices = @transform_5, window_bounds = array<i64: 32, 8>}, {pipeline_mode = #tpu.pipeline_mode<synchronous>, transform_indices = @transform_6, window_bounds = array<i64: 32, 1>}, {pipeline_mode = #tpu.pipeline_mode<synchronous>, transform_indices = @transform_7, window_bounds = array<i64: 16, 32>}, {pipeline_mode = #tpu.pipeline_mode<synchronous>, transform_indices = @transform_8, window_bounds = array<i64: 16, 1>}, {transform_indices = @transform_9, window_bounds = array<i64: 8, 128>}, {transform_indices = @transform_10, window_bounds = array<i64: 16, 128>}]} {
    %c0 = arith.constant 0 : index
    %c0_0 = arith.constant 0 : index
    %0 = vector.load %arg1[%c0, %c0_0] : memref<16x128xbf16, #tpu.memory_space<vmem>>, vector<16x128xbf16>
    %c0_1 = arith.constant 0 : index
    %c0_2 = arith.constant 0 : index
    %1 = vector.load %arg2[%c0_1, %c0_2] : memref<32x16xbf16, #tpu.memory_space<vmem>>, vector<32x16xbf16>
    %cst = arith.constant dense<0.000000e+00> : vector<32x128xf32>
    %2 = tpu.matmul %1, %0, %cst {dimension_numbers = #tpu.dot_dimension_numbers<[1], [0], [0], [1], [0, 0, 1, 1], [], []>} : vector<32x16xbf16>, vector<16x128xbf16>, vector<32x128xf32> -> vector<32x128xf32>
    %c0_3 = arith.constant 0 : index
    %c0_4 = arith.constant 0 : index
    %3 = vector.load %arg3[%c0_3, %c0_4] : memref<32x1xf32, #tpu.memory_space<vmem>>, vector<32x1xf32>
    %4 = vector.broadcast %3 : vector<32x1xf32> to vector<32x128xf32>
    %5 = arith.addf %2, %4 : vector<32x128xf32>
    %cst_5 = arith.constant 0.000000e+00 : f32
    %6 = vector.broadcast %cst_5 : f32 to vector<32x128xf32>
    %7 = arith.maximumf %5, %6 : vector<32x128xf32>
    %8 = arith.truncf %7 : vector<32x128xf32> to vector<32x128xbf16>
    %c0_6 = arith.constant 0 : index
    %c0_7 = arith.constant 0 : index
    %9 = vector.load %arg4[%c0_6, %c0_7] : memref<8x32xbf16, #tpu.memory_space<vmem>>, vector<8x32xbf16>
    %cst_8 = arith.constant dense<0.000000e+00> : vector<8x128xf32>
    %10 = tpu.matmul %9, %8, %cst_8 {dimension_numbers = #tpu.dot_dimension_numbers<[1], [0], [0], [1], [0, 0, 1, 1], [], []>} : vector<8x32xbf16>, vector<32x128xbf16>, vector<8x128xf32> -> vector<8x128xf32>
    %c0_9 = arith.constant 0 : index
    %c0_10 = arith.constant 0 : index
    %11 = vector.load %arg5[%c0_9, %c0_10] : memref<8x1xf32, #tpu.memory_space<vmem>>, vector<8x1xf32>
    %12 = vector.broadcast %11 : vector<8x1xf32> to vector<8x128xf32>
    %13 = arith.addf %10, %12 : vector<8x128xf32>
    %cst_11 = arith.constant 0.000000e+00 : f32
    %14 = vector.broadcast %cst_11 : f32 to vector<8x128xf32>
    %15 = arith.maximumf %13, %14 : vector<8x128xf32>
    %c0_12 = arith.constant 0 : index
    %c0_13 = arith.constant 0 : index
    %16 = vector.load %arg10[%c0_12, %c0_13] : memref<8x128xf32, #tpu.memory_space<vmem>>, vector<8x128xf32>
    tpu.vector_store %arg10[%c0_12, %c0_13], %15 {strides = array<i32>} : memref<8x128xf32, #tpu.memory_space<vmem>>, vector<8x128xf32>,
    %17 = arith.truncf %15 : vector<8x128xf32> to vector<8x128xbf16>
    %c0_14 = arith.constant 0 : index
    %c0_15 = arith.constant 0 : index
    %18 = vector.load %arg6[%c0_14, %c0_15] : memref<32x8xbf16, #tpu.memory_space<vmem>>, vector<32x8xbf16>
    %cst_16 = arith.constant dense<0.000000e+00> : vector<32x128xf32>
    %19 = tpu.matmul %18, %17, %cst_16 {dimension_numbers = #tpu.dot_dimension_numbers<[1], [0], [0], [1], [0, 0, 1, 1], [], []>} : vector<32x8xbf16>, vector<8x128xbf16>, vector<32x128xf32> -> vector<32x128xf32>
    %c0_17 = arith.constant 0 : index
    %c0_18 = arith.constant 0 : index
    %20 = vector.load %arg7[%c0_17, %c0_18] : memref<32x1xf32, #tpu.memory_space<vmem>>, vector<32x1xf32>
    %21 = vector.broadcast %20 : vector<32x1xf32> to vector<32x128xf32>
    %22 = arith.addf %19, %21 : vector<32x128xf32>
    %cst_19 = arith.constant 0.000000e+00 : f32
    %23 = vector.broadcast %cst_19 : f32 to vector<32x128xf32>
    %24 = arith.maximumf %22, %23 : vector<32x128xf32>
    %25 = arith.truncf %24 : vector<32x128xf32> to vector<32x128xbf16>
    %c0_20 = arith.constant 0 : index
    %c0_21 = arith.constant 0 : index
    %26 = vector.load %arg8[%c0_20, %c0_21] : memref<16x32xbf16, #tpu.memory_space<vmem>>, vector<16x32xbf16>
    %cst_22 = arith.constant dense<0.000000e+00> : vector<16x128xf32>
    %27 = tpu.matmul %26, %25, %cst_22 {dimension_numbers = #tpu.dot_dimension_numbers<[1], [0], [0], [1], [0, 0, 1, 1], [], []>} : vector<16x32xbf16>, vector<32x128xbf16>, vector<16x128xf32> -> vector<16x128xf32>
    %c0_23 = arith.constant 0 : index
    %c0_24 = arith.constant 0 : index
    %28 = vector.load %arg9[%c0_23, %c0_24] : memref<16x1xf32, #tpu.memory_space<vmem>>, vector<16x1xf32>
    %29 = vector.broadcast %28 : vector<16x1xf32> to vector<16x128xf32>
    %30 = arith.addf %27, %29 : vector<16x128xf32>
    %c0_25 = arith.constant 0 : index
    %c0_26 = arith.constant 0 : index
    %31 = vector.load %arg11[%c0_25, %c0_26] : memref<16x128xf32, #tpu.memory_space<vmem>>, vector<16x128xf32>
    tpu.vector_store %arg11[%c0_25, %c0_26], %30 {strides = array<i32>} : memref<16x128xf32, #tpu.memory_space<vmem>>, vector<16x128xf32>,
    return
  }
  func.func @transform_0(%arg0: i32) -> (i32, i32) {
    %c0_i32 = arith.constant 0 : i32
    %c0_i32_0 = arith.constant 0 : i32
    return %c0_i32, %arg0 : i32, i32
  }
  func.func @transform_1(%arg0: i32) -> (i32, i32) {
    %c0_i32 = arith.constant 0 : i32
    %c0_i32_0 = arith.constant 0 : i32
    %c0_i32_1 = arith.constant 0 : i32
    return %c0_i32, %c0_i32_0 : i32, i32
  }
  func.func @transform_2(%arg0: i32) -> (i32, i32) {
    %c0_i32 = arith.constant 0 : i32
    %c0_i32_0 = arith.constant 0 : i32
    %c0_i32_1 = arith.constant 0 : i32
    return %c0_i32, %c0_i32_0 : i32, i32
  }
  func.func @transform_3(%arg0: i32) -> (i32, i32) {
    %c0_i32 = arith.constant 0 : i32
    %c0_i32_0 = arith.constant 0 : i32
    %c0_i32_1 = arith.constant 0 : i32
    return %c0_i32, %c0_i32_0 : i32, i32
  }
  func.func @transform_4(%arg0: i32) -> (i32, i32) {
    %c0_i32 = arith.constant 0 : i32
    %c0_i32_0 = arith.constant 0 : i32
    %c0_i32_1 = arith.constant 0 : i32
    return %c0_i32, %c0_i32_0 : i32, i32
  }
  func.func @transform_5(%arg0: i32) -> (i32, i32) {
    %c0_i32 = arith.constant 0 : i32
    %c0_i32_0 = arith.constant 0 : i32
    %c0_i32_1 = arith.constant 0 : i32
    return %c0_i32, %c0_i32_0 : i32, i32
  }
  func.func @transform_6(%arg0: i32) -> (i32, i32) {
    %c0_i32 = arith.constant 0 : i32
    %c0_i32_0 = arith.constant 0 : i32
    %c0_i32_1 = arith.constant 0 : i32
    return %c0_i32, %c0_i32_0 : i32, i32
  }
  func.func @transform_7(%arg0: i32) -> (i32, i32) {
    %c0_i32 = arith.constant 0 : i32
    %c0_i32_0 = arith.constant 0 : i32
    %c0_i32_1 = arith.constant 0 : i32
    return %c0_i32, %c0_i32_0 : i32, i32
  }
  func.func @transform_8(%arg0: i32) -> (i32, i32) {
    %c0_i32 = arith.constant 0 : i32
    %c0_i32_0 = arith.constant 0 : i32
    %c0_i32_1 = arith.constant 0 : i32
    return %c0_i32, %c0_i32_0 : i32, i32
  }
  func.func @transform_9(%arg0: i32) -> (i32, i32) {
    %c0_i32 = arith.constant 0 : i32
    %c0_i32_0 = arith.constant 0 : i32
    return %c0_i32, %arg0 : i32, i32
  }
  func.func @transform_10(%arg0: i32) -> (i32, i32) {
    %c0_i32 = arith.constant 0 : i32
    %c0_i32_0 = arith.constant 0 : i32
    return %c0_i32, %arg0 : i32, i32
  }
}

module attributes {stable_mosaic.version = 11 : i64} {
  func.func @_ae_kernel(%arg0: i32, %arg1: memref<16x128xbf16, #tpu.memory_space<vmem>>, %arg2: memref<32x16xbf16, #tpu.memory_space<vmem>>, %arg3: memref<32x1xf32, #tpu.memory_space<vmem>>, %arg4: memref<8x32xbf16, #tpu.memory_space<vmem>>, %arg5: memref<8x1xf32, #tpu.memory_space<vmem>>, %arg6: memref<32x8xbf16, #tpu.memory_space<vmem>>, %arg7: memref<32x1xf32, #tpu.memory_space<vmem>>, %arg8: memref<16x32xbf16, #tpu.memory_space<vmem>>, %arg9: memref<16x1xf32, #tpu.memory_space<vmem>>, %arg10: memref<8x128xf32, #tpu.memory_space<vmem>>, %arg11: memref<16x128xf32, #tpu.memory_space<vmem>>) attributes {dimension_semantics = [#tpu.dimension_semantics<parallel>], iteration_bounds = array<i64: 2>, scalar_prefetch = 0 : i64, scratch_operands = 0 : i64, tpu.core_type = #tpu.core_type<tc>, window_params = [{transform_indices = @transform_0, window_bounds = array<i64: 16, 128>}, {pipeline_mode = #tpu.pipeline_mode<synchronous>, transform_indices = @transform_1, window_bounds = array<i64: 32, 16>}, {pipeline_mode = #tpu.pipeline_mode<synchronous>, transform_indices = @transform_2, window_bounds = array<i64: 32, 1>}, {pipeline_mode = #tpu.pipeline_mode<synchronous>, transform_indices = @transform_3, window_bounds = array<i64: 8, 32>}, {pipeline_mode = #tpu.pipeline_mode<synchronous>, transform_indices = @transform_4, window_bounds = array<i64: 8, 1>}, {pipeline_mode = #tpu.pipeline_mode<synchronous>, transform_indices = @transform_5, window_bounds = array<i64: 32, 8>}, {pipeline_mode = #tpu.pipeline_mode<synchronous>, transform_indices = @transform_6, window_bounds = array<i64: 32, 1>}, {pipeline_mode = #tpu.pipeline_mode<synchronous>, transform_indices = @transform_7, window_bounds = array<i64: 16, 32>}, {pipeline_mode = #tpu.pipeline_mode<synchronous>, transform_indices = @transform_8, window_bounds = array<i64: 16, 1>}, {transform_indices = @transform_9, window_bounds = array<i64: 8, 128>}, {transform_indices = @transform_10, window_bounds = array<i64: 16, 128>}]} {
    %c0 = arith.constant 0 : index
    %c0_0 = arith.constant 0 : index
    %0 = vector.load %arg1[%c0, %c0_0] : memref<16x128xbf16, #tpu.memory_space<vmem>>, vector<16x128xbf16>
    %c0_1 = arith.constant 0 : index
    %c0_2 = arith.constant 0 : index
    %1 = vector.load %arg2[%c0_1, %c0_2] : memref<32x16xbf16, #tpu.memory_space<vmem>>, vector<32x16xbf16>
    %cst = arith.constant dense<0.000000e+00> : vector<32x128xf32>
    %2 = tpu.matmul %1, %0, %cst {dimension_numbers = #tpu.dot_dimension_numbers<[1], [0], [0], [1], [0, 0, 1, 1], [], []>} : vector<32x16xbf16>, vector<16x128xbf16>, vector<32x128xf32> -> vector<32x128xf32>
    %c0_3 = arith.constant 0 : index
    %c0_4 = arith.constant 0 : index
    %3 = vector.load %arg3[%c0_3, %c0_4] : memref<32x1xf32, #tpu.memory_space<vmem>>, vector<32x1xf32>
    %4 = vector.broadcast %3 : vector<32x1xf32> to vector<32x128xf32>
    %5 = arith.addf %2, %4 : vector<32x128xf32>
    %cst_5 = arith.constant 0.000000e+00 : f32
    %6 = vector.broadcast %cst_5 : f32 to vector<32x128xf32>
    %7 = arith.maximumf %5, %6 : vector<32x128xf32>
    %8 = arith.truncf %7 : vector<32x128xf32> to vector<32x128xbf16>
    %c0_6 = arith.constant 0 : index
    %c0_7 = arith.constant 0 : index
    %9 = vector.load %arg4[%c0_6, %c0_7] : memref<8x32xbf16, #tpu.memory_space<vmem>>, vector<8x32xbf16>
    %cst_8 = arith.constant dense<0.000000e+00> : vector<8x128xf32>
    %10 = tpu.matmul %9, %8, %cst_8 {dimension_numbers = #tpu.dot_dimension_numbers<[1], [0], [0], [1], [0, 0, 1, 1], [], []>} : vector<8x32xbf16>, vector<32x128xbf16>, vector<8x128xf32> -> vector<8x128xf32>
    %c0_9 = arith.constant 0 : index
    %c0_10 = arith.constant 0 : index
    %11 = vector.load %arg5[%c0_9, %c0_10] : memref<8x1xf32, #tpu.memory_space<vmem>>, vector<8x1xf32>
    %12 = vector.broadcast %11 : vector<8x1xf32> to vector<8x128xf32>
    %13 = arith.addf %10, %12 : vector<8x128xf32>
    %cst_11 = arith.constant 0.000000e+00 : f32
    %14 = vector.broadcast %cst_11 : f32 to vector<8x128xf32>
    %15 = arith.maximumf %13, %14 : vector<8x128xf32>
    %c0_12 = arith.constant 0 : index
    %c0_13 = arith.constant 0 : index
    %16 = vector.load %arg10[%c0_12, %c0_13] : memref<8x128xf32, #tpu.memory_space<vmem>>, vector<8x128xf32>
    tpu.vector_store %arg10[%c0_12, %c0_13], %15 {strides = array<i32>} : memref<8x128xf32, #tpu.memory_space<vmem>>, vector<8x128xf32>,
    %17 = arith.truncf %15 : vector<8x128xf32> to vector<8x128xbf16>
    %c0_14 = arith.constant 0 : index
    %c0_15 = arith.constant 0 : index
    %18 = vector.load %arg6[%c0_14, %c0_15] : memref<32x8xbf16, #tpu.memory_space<vmem>>, vector<32x8xbf16>
    %cst_16 = arith.constant dense<0.000000e+00> : vector<32x128xf32>
    %19 = tpu.matmul %18, %17, %cst_16 {dimension_numbers = #tpu.dot_dimension_numbers<[1], [0], [0], [1], [0, 0, 1, 1], [], []>} : vector<32x8xbf16>, vector<8x128xbf16>, vector<32x128xf32> -> vector<32x128xf32>
    %c0_17 = arith.constant 0 : index
    %c0_18 = arith.constant 0 : index
    %20 = vector.load %arg7[%c0_17, %c0_18] : memref<32x1xf32, #tpu.memory_space<vmem>>, vector<32x1xf32>
    %21 = vector.broadcast %20 : vector<32x1xf32> to vector<32x128xf32>
    %22 = arith.addf %19, %21 : vector<32x128xf32>
    %cst_19 = arith.constant 0.000000e+00 : f32
    %23 = vector.broadcast %cst_19 : f32 to vector<32x128xf32>
    %24 = arith.maximumf %22, %23 : vector<32x128xf32>
    %25 = arith.truncf %24 : vector<32x128xf32> to vector<32x128xbf16>
    %c0_20 = arith.constant 0 : index
    %c0_21 = arith.constant 0 : index
    %26 = vector.load %arg8[%c0_20, %c0_21] : memref<16x32xbf16, #tpu.memory_space<vmem>>, vector<16x32xbf16>
    %cst_22 = arith.constant dense<0.000000e+00> : vector<16x128xf32>
    %27 = tpu.matmul %26, %25, %cst_22 {dimension_numbers = #tpu.dot_dimension_numbers<[1], [0], [0], [1], [0, 0, 1, 1], [], []>} : vector<16x32xbf16>, vector<32x128xbf16>, vector<16x128xf32> -> vector<16x128xf32>
    %c0_23 = arith.constant 0 : index
    %c0_24 = arith.constant 0 : index
    %28 = vector.load %arg9[%c0_23, %c0_24] : memref<16x1xf32, #tpu.memory_space<vmem>>, vector<16x1xf32>
    %29 = vector.broadcast %28 : vector<16x1xf32> to vector<16x128xf32>
    %30 = arith.addf %27, %29 : vector<16x128xf32>
    %c0_25 = arith.constant 0 : index
    %c0_26 = arith.constant 0 : index
    %31 = vector.load %arg11[%c0_25, %c0_26] : memref<16x128xf32, #tpu.memory_space<vmem>>, vector<16x128xf32>
    tpu.vector_store %arg11[%c0_25, %c0_26], %30 {strides = array<i32>} : memref<16x128xf32, #tpu.memory_space<vmem>>, vector<16x128xf32>,
    return
  }
  func.func @transform_0(%arg0: i32) -> (i32, i32) {
    %c0_i32 = arith.constant 0 : i32
    %c0_i32_0 = arith.constant 0 : i32
    return %c0_i32, %arg0 : i32, i32
  }
  func.func @transform_1(%arg0: i32) -> (i32, i32) {
    %c0_i32 = arith.constant 0 : i32
    %c0_i32_0 = arith.constant 0 : i32
    %c0_i32_1 = arith.constant 0 : i32
    return %c0_i32, %c0_i32_0 : i32, i32
  }
  func.func @transform_2(%arg0: i32) -> (i32, i32) {
    %c0_i32 = arith.constant 0 : i32
    %c0_i32_0 = arith.constant 0 : i32
    %c0_i32_1 = arith.constant 0 : i32
    return %c0_i32, %c0_i32_0 : i32, i32
  }
  func.func @transform_3(%arg0: i32) -> (i32, i32) {
    %c0_i32 = arith.constant 0 : i32
    %c0_i32_0 = arith.constant 0 : i32
    %c0_i32_1 = arith.constant 0 : i32
    return %c0_i32, %c0_i32_0 : i32, i32
  }
  func.func @transform_4(%arg0: i32) -> (i32, i32) {
    %c0_i32 = arith.constant 0 : i32
    %c0_i32_0 = arith.constant 0 : i32
    %c0_i32_1 = arith.constant 0 : i32
    return %c0_i32, %c0_i32_0 : i32, i32
  }
  func.func @transform_5(%arg0: i32) -> (i32, i32) {
    %c0_i32 = arith.constant 0 : i32
    %c0_i32_0 = arith.constant 0 : i32
    %c0_i32_1 = arith.constant 0 : i32
    return %c0_i32, %c0_i32_0 : i32, i32
  }
  func.func @transform_6(%arg0: i32) -> (i32, i32) {
    %c0_i32 = arith.constant 0 : i32
    %c0_i32_0 = arith.constant 0 : i32
    %c0_i32_1 = arith.constant 0 : i32
    return %c0_i32, %c0_i32_0 : i32, i32
  }
  func.func @transform_7(%arg0: i32) -> (i32, i32) {
    %c0_i32 = arith.constant 0 : i32
    %c0_i32_0 = arith.constant 0 : i32
    %c0_i32_1 = arith.constant 0 : i32
    return %c0_i32, %c0_i32_0 : i32, i32
  }
  func.func @transform_8(%arg0: i32) -> (i32, i32) {
    %c0_i32 = arith.constant 0 : i32
    %c0_i32_0 = arith.constant 0 : i32
    %c0_i32_1 = arith.constant 0 : i32
    return %c0_i32, %c0_i32_0 : i32, i32
  }
  func.func @transform_9(%arg0: i32) -> (i32, i32) {
    %c0_i32 = arith.constant 0 : i32
    %c0_i32_0 = arith.constant 0 : i32
    return %c0_i32, %arg0 : i32, i32
  }
  func.func @transform_10(%arg0: i32) -> (i32, i32) {
    %c0_i32 = arith.constant 0 : i32
    %c0_i32_0 = arith.constant 0 : i32
    return %c0_i32, %arg0 : i32, i32
  }
}

</mosaic_0001>

<llo_original>
// kernel: deep_autoencoder.1
$region0: #{deep_autoencoder.1}
  #allocation0 [shape = 'u32[]', space=smem, size = 0x4, offset = 0x4, fixed_abs, tag = 'smem constant byte address 0x4 - core index']
  #allocation1 [shape = 'u32[72,128]{1,0:T(1,128)}', space=vmem, size = 0x9000, scoped, tag = 'internal scratch']
  %s0 = inlined_call_operand.vmem [shape: bf16[16,256], index: 0, kind: input, shape index: {}]
  %s1 = inlined_call_operand.vmem [shape: bf16[32,16], index: 1, kind: input, shape index: {}]
  %s2 = inlined_call_operand.vmem [shape: f32[32,1], index: 2, kind: input, shape index: {}]
  %s3 = inlined_call_operand.vmem [shape: bf16[8,32], index: 3, kind: input, shape index: {}]
  %s4 = inlined_call_operand.vmem [shape: f32[8,1], index: 4, kind: input, shape index: {}]
  %s5 = inlined_call_operand.vmem [shape: bf16[32,8], index: 5, kind: input, shape index: {}]
  %s6 = inlined_call_operand.vmem [shape: f32[32,1], index: 6, kind: input, shape index: {}]
  %s7 = inlined_call_operand.vmem [shape: bf16[16,32], index: 7, kind: input, shape index: {}]
  %s8 = inlined_call_operand.vmem [shape: f32[16,1], index: 8, kind: input, shape index: {}]
  %s9 = inlined_call_operand.hbm [shape: f32[8,256], index: 9, kind: output, shape index: {0}]
  %s10 = inlined_call_operand.hbm [shape: f32[16,256], index: 10, kind: output, shape index: {1}]
  %11 = xla_tuple %s9, %s10
  %s12 = sld [smem:[#allocation0]]
  $region118: #{deep_autoencoder.1} parent=0
    _
  %s14 = ssub.s32 1, %s12
  %s15 = scalar_select 0, %s14, %s12
  $region1: #{deep_autoencoder.1} parent=0
    #allocation2 [shape = 'u8[8192]{0}', space=vmem, size = 0x2000, scoped, tag = 'input window, operand 0']
    #allocation3 [shape = 'u8[8192]{0}', space=vmem, size = 0x2000, scoped, tag = 'output window, operand 0']
    #allocation4 [shape = 's32[2]{0}', space=sflag, size = 0x8, scoped, tag = 'scoped memory for deep_autoencoder.1']
    #allocation5 [shape = 'u8[16384]{0}', space=vmem, size = 0x4000, scoped, tag = 'output window, operand 1']
    #allocation6 [shape = 's32[2]{0}', space=sflag, size = 0x8, scoped, tag = 'scoped memory for deep_autoencoder.1']
    %16 = vsyncpa [#allocation4], 0
    %s17 = scalar_lea.sflag [#allocation4], 1
    %18 = vsyncpa %s17, 0
    %19 = vsyncpa [#allocation6], 0
    %s20 = scalar_lea.sflag [#allocation6], 1
    %21 = vsyncpa %s20, 0
    loop: start=0, step=1, limit=4
    $region2: #{deep_autoencoder.1} parent=1 // loop_pre_header
      _
    $region3: #{deep_autoencoder.1} parent=1 // loop_header
      %s23 = sphi 0, %s27
      %p24 = scmp.ge.s32.totalorder %s23, 4
      %s33 = sphi 0, %s35
      %s36 = sphi 0, %s33
      %s37 = sphi 0, %s36
      %s53 = sphi 0, %s37
      %s57 = sphi 0, %s57
      %s59 = sphi 0, %s57
      %s60 = sphi 0, %s59
      %s74 = sphi 0, %s60
      %s78 = sphi 0, %s78
      %s80 = sphi 0, %s78
      %s81 = sphi 0, %s80
      %s95 = sphi 0, %s81
      %s99 = sphi 0, %s99
      %s101 = sphi 0, %s99
      %s102 = sphi 0, %s101
      %s116 = sphi 0, %s102
      %s120 = sphi 0, %s120
      %s122 = sphi 0, %s120
      %s123 = sphi 0, %s122
      %s137 = sphi 0, %s123
      %s141 = sphi 0, %s141
      %s143 = sphi 0, %s141
      %s144 = sphi 0, %s143
      %s158 = sphi 0, %s144
      %s162 = sphi 0, %s162
      %s164 = sphi 0, %s162
      %s165 = sphi 0, %s164
      %s179 = sphi 0, %s165
      %s183 = sphi 0, %s183
      %s185 = sphi 0, %s183
      %s186 = sphi 0, %s185
      %s200 = sphi 0, %s186
      %s204 = sphi 0, %s204
      %s206 = sphi 0, %s204
      %s207 = sphi 0, %s206
      %s221 = sphi 0, %s207
      %s227 = sphi 0, %s229
      %s230 = sphi 0, %s227
      %s231 = sphi 0, %s230
      %s247 = sphi 0, %s231
      %s253 = sphi 0, %s255
      %s256 = sphi 0, %s253
      %s257 = sphi 0, %s256
      %s273 = sphi 0, %s257
    $region4: #{deep_autoencoder.1} parent=1 // loop_header_branch
      %26 = sbr.rel (%p24) target = $region8
    $region5: #{deep_autoencoder.1} parent=1 // loop_body
      %s28 = ssub.s32 %s23, 1
      %s29 = ssub.s32 %s23, 2
      %s30 = sadd.s32 %s23, 1
      %s31 = ssub.s32 %s23, %s30
      %p32 = scmp.eq.s32.totalorder %s31, 0
      %s34 = sadd.s32 %s33, 1
      %s35 = scalar_select %p32, %s33, %s34
      %p38 = pneg %p32
      %p39 = scmp.eq.s32.totalorder %s23, 1
      %p40 = por %p38, %p39
      %p41 = scmp.ne.s32.totalorder %s33, %s36
      %p42 = scmp.eq.s32.totalorder %s23, 0
      %p43 = por %p41, %p42
      %p44 = scmp.ne.s32.totalorder %s33, %s36
      %p45 = scmp.eq.s32.totalorder %s28, 1
      %p46 = por %p44, %p45
      %p47 = scmp.ne.s32.totalorder %s36, %s37
      %p48 = scmp.eq.s32.totalorder %s28, 0
      %p49 = por %p47, %p48
      %p50 = scmp.ne.s32.totalorder %s36, %s37
      %p51 = scmp.eq.s32.totalorder %s29, 1
      %p52 = por %p50, %p51
      %p54 = scmp.ne.s32.totalorder %s37, %s53
      %p55 = scmp.eq.s32.totalorder %s29, 0
      %p56 = por %p54, %p55
      %s58 = sadd.s32 %s57, 1
      %p61 = scmp.eq.s32.totalorder %s23, 1
      %p62 = scmp.ne.s32.totalorder %s57, %s59
      %p63 = scmp.eq.s32.totalorder %s23, 0
      %p64 = por %p62, %p63
      %p65 = scmp.ne.s32.totalorder %s57, %s59
      %p66 = scmp.eq.s32.totalorder %s28, 1
      %p67 = por %p65, %p66
      %p68 = scmp.ne.s32.totalorder %s59, %s60
      %p69 = scmp.eq.s32.totalorder %s28, 0
      %p70 = por %p68, %p69
      %p71 = scmp.ne.s32.totalorder %s59, %s60
      %p72 = scmp.eq.s32.totalorder %s29, 1
      %p73 = por %p71, %p72
      %p75 = scmp.ne.s32.totalorder %s60, %s74
      %p76 = scmp.eq.s32.totalorder %s29, 0
      %p77 = por %p75, %p76
      %s79 = sadd.s32 %s78, 1
      %p82 = scmp.eq.s32.totalorder %s23, 1
      %p83 = scmp.ne.s32.totalorder %s78, %s80
      %p84 = scmp.eq.s32.totalorder %s23, 0
      %p85 = por %p83, %p84
      %p86 = scmp.ne.s32.totalorder %s78, %s80
      %p87 = scmp.eq.s32.totalorder %s28, 1
      %p88 = por %p86, %p87
      %p89 = scmp.ne.s32.totalorder %s80, %s81
      %p90 = scmp.eq.s32.totalorder %s28, 0
      %p91 = por %p89, %p90
      %p92 = scmp.ne.s32.totalorder %s80, %s81
      %p93 = scmp.eq.s32.totalorder %s29, 1
      %p94 = por %p92, %p93
      %p96 = scmp.ne.s32.totalorder %s81, %s95
      %p97 = scmp.eq.s32.totalorder %s29, 0
      %p98 = por %p96, %p97
      %s100 = sadd.s32 %s99, 1
      %p103 = scmp.eq.s32.totalorder %s23, 1
      %p104 = scmp.ne.s32.totalorder %s99, %s101
      %p105 = scmp.eq.s32.totalorder %s23, 0
      %p106 = por %p104, %p105
      %p107 = scmp.ne.s32.totalorder %s99, %s101
      %p108 = scmp.eq.s32.totalorder %s28, 1
      %p109 = por %p107, %p108
      %p110 = scmp.ne.s32.totalorder %s101, %s102
      %p111 = scmp.eq.s32.totalorder %s28, 0
      %p112 = por %p110, %p111
      %p113 = scmp.ne.s32.totalorder %s101, %s102
      %p114 = scmp.eq.s32.totalorder %s29, 1
      %p115 = por %p113, %p114
      %p117 = scmp.ne.s32.totalorder %s102, %s116
      %p118 = scmp.eq.s32.totalorder %s29, 0
      %p119 = por %p117, %p118
      %s121 = sadd.s32 %s120, 1
      %p124 = scmp.eq.s32.totalorder %s23, 1
      %p125 = scmp.ne.s32.totalorder %s120, %s122
      %p126 = scmp.eq.s32.totalorder %s23, 0
      %p127 = por %p125, %p126
      %p128 = scmp.ne.s32.totalorder %s120, %s122
      %p129 = scmp.eq.s32.totalorder %s28, 1
      %p130 = por %p128, %p129
      %p131 = scmp.ne.s32.totalorder %s122, %s123
      %p132 = scmp.eq.s32.totalorder %s28, 0
      %p133 = por %p131, %p132
      %p134 = scmp.ne.s32.totalorder %s122, %s123
      %p135 = scmp.eq.s32.totalorder %s29, 1
      %p136 = por %p134, %p135
      %p138 = scmp.ne.s32.totalorder %s123, %s137
      %p139 = scmp.eq.s32.totalorder %s29, 0
      %p140 = por %p138, %p139
      %s142 = sadd.s32 %s141, 1
      %p145 = scmp.eq.s32.totalorder %s23, 1
      %p146 = scmp.ne.s32.totalorder %s141, %s143
      %p147 = scmp.eq.s32.totalorder %s23, 0
      %p148 = por %p146, %p147
      %p149 = scmp.ne.s32.totalorder %s141, %s143
      %p150 = scmp.eq.s32.totalorder %s28, 1
      %p151 = por %p149, %p150
      %p152 = scmp.ne.s32.totalorder %s143, %s144
      %p153 = scmp.eq.s32.totalorder %s28, 0
      %p154 = por %p152, %p153
      %p155 = scmp.ne.s32.totalorder %s143, %s144
      %p156 = scmp.eq.s32.totalorder %s29, 1
      %p157 = por %p155, %p156
      %p159 = scmp.ne.s32.totalorder %s144, %s158
      %p160 = scmp.eq.s32.totalorder %s29, 0
      %p161 = por %p159, %p160
      %s163 = sadd.s32 %s162, 1
      %p166 = scmp.eq.s32.totalorder %s23, 1
      %p167 = scmp.ne.s32.totalorder %s162, %s164
      %p168 = scmp.eq.s32.totalorder %s23, 0
      %p169 = por %p167, %p168
      %p170 = scmp.ne.s32.totalorder %s162, %s164
      %p171 = scmp.eq.s32.totalorder %s28, 1
      %p172 = por %p170, %p171
      %p173 = scmp.ne.s32.totalorder %s164, %s165
      %p174 = scmp.eq.s32.totalorder %s28, 0
      %p175 = por %p173, %p174
      %p176 = scmp.ne.s32.totalorder %s164, %s165
      %p177 = scmp.eq.s32.totalorder %s29, 1
      %p178 = por %p176, %p177
      %p180 = scmp.ne.s32.totalorder %s165, %s179
      %p181 = scmp.eq.s32.totalorder %s29, 0
      %p182 = por %p180, %p181
      %s184 = sadd.s32 %s183, 1
      %p187 = scmp.eq.s32.totalorder %s23, 1
      %p188 = scmp.ne.s32.totalorder %s183, %s185
      %p189 = scmp.eq.s32.totalorder %s23, 0
      %p190 = por %p188, %p189
      %p191 = scmp.ne.s32.totalorder %s183, %s185
      %p192 = scmp.eq.s32.totalorder %s28, 1
      %p193 = por %p191, %p192
      %p194 = scmp.ne.s32.totalorder %s185, %s186
      %p195 = scmp.eq.s32.totalorder %s28, 0
      %p196 = por %p194, %p195
      %p197 = scmp.ne.s32.totalorder %s185, %s186
      %p198 = scmp.eq.s32.totalorder %s29, 1
      %p199 = por %p197, %p198
      %p201 = scmp.ne.s32.totalorder %s186, %s200
      %p202 = scmp.eq.s32.totalorder %s29, 0
      %p203 = por %p201, %p202
      %s205 = sadd.s32 %s204, 1
      %p208 = scmp.eq.s32.totalorder %s23, 1
      %p209 = scmp.ne.s32.totalorder %s204, %s206
      %p210 = scmp.eq.s32.totalorder %s23, 0
      %p211 = por %p209, %p210
      %p212 = scmp.ne.s32.totalorder %s204, %s206
      %p213 = scmp.eq.s32.totalorder %s28, 1
      %p214 = por %p212, %p213
      %p215 = scmp.ne.s32.totalorder %s206, %s207
      %p216 = scmp.eq.s32.totalorder %s28, 0
      %p217 = por %p215, %p216
      %p218 = scmp.ne.s32.totalorder %s206, %s207
      %p219 = scmp.eq.s32.totalorder %s29, 1
      %p220 = por %p218, %p219
      %p222 = scmp.ne.s32.totalorder %s207, %s221
      %p223 = scmp.eq.s32.totalorder %s29, 0
      %p224 = por %p222, %p223
      %s225 = ssub.s32 %s23, %s30
      %p226 = scmp.eq.s32.totalorder %s225, 0
      %s228 = sadd.s32 %s227, 1
      %s229 = scalar_select %p226, %s227, %s228
      %p232 = pneg %p226
      %p233 = scmp.eq.s32.totalorder %s23, 1
      %p234 = por %p232, %p233
      %p235 = scmp.ne.s32.totalorder %s227, %s230
      %p236 = scmp.eq.s32.totalorder %s23, 0
      %p237 = por %p235, %p236
      %p238 = scmp.ne.s32.totalorder %s227, %s230
      %p239 = scmp.eq.s32.totalorder %s28, 1
      %p240 = por %p238, %p239
      %p241 = scmp.ne.s32.totalorder %s230, %s231
      %p242 = scmp.eq.s32.totalorder %s28, 0
      %p243 = por %p241, %p242
      %p244 = scmp.ne.s32.totalorder %s230, %s231
      %p245 = scmp.eq.s32.totalorder %s29, 1
      %p246 = por %p244, %p245
      %p248 = scmp.ne.s32.totalorder %s231, %s247
      %p249 = scmp.eq.s32.totalorder %s29, 0
      %p250 = por %p248, %p249
      %s251 = ssub.s32 %s23, %s30
      %p252 = scmp.eq.s32.totalorder %s251, 0
      %s254 = sadd.s32 %s253, 1
      %s255 = scalar_select %p252, %s253, %s254
      %p258 = pneg %p252
      %p259 = scmp.eq.s32.totalorder %s23, 1
      %p260 = por %p258, %p259
      %p261 = scmp.ne.s32.totalorder %s253, %s256
      %p262 = scmp.eq.s32.totalorder %s23, 0
      %p263 = por %p261, %p262
      %p264 = scmp.ne.s32.totalorder %s253, %s256
      %p265 = scmp.eq.s32.totalorder %s28, 1
      %p266 = por %p264, %p265
      %p267 = scmp.ne.s32.totalorder %s256, %s257
      %p268 = scmp.eq.s32.totalorder %s28, 0
      %p269 = por %p267, %p268
      %p270 = scmp.ne.s32.totalorder %s256, %s257
      %p271 = scmp.eq.s32.totalorder %s29, 1
      %p272 = por %p270, %p271
      %p274 = scmp.ne.s32.totalorder %s257, %s273
      %p275 = scmp.eq.s32.totalorder %s29, 0
      %p276 = por %p274, %p275
      %p277 = scmp.le.s32.totalorder 1, %s23
      %p278 = scmp.lt.s32.totalorder %s23, 3
      %p279 = pnand %p277, %p278
      %p280 = pneg %p279
      // Predicated region
      $region9: #{deep_autoencoder.1} parent=5 // pred_check
        _
      $region10: #{deep_autoencoder.1} parent=5 // pred_check_branch
        %282 = sbr.rel (%p279) target = $region12
      $region11: #{deep_autoencoder.1} parent=5 // pred_region
        %s283 = ssub.s32 %s23, 1
        // Predicated region
        $region13: #{deep_autoencoder.1} parent=11 // pred_check
          %p284 = pneg %p70
        $region14: #{deep_autoencoder.1} parent=11 // pred_check_branch
          %286 = sbr.rel (%p284) target = $region16
        $region15: #{deep_autoencoder.1} parent=11 // pred_region
          _
        $region16: #{deep_autoencoder.1} parent=11 // pred_fallthru
          _
        // Predicated region
        $region17: #{deep_autoencoder.1} parent=11 // pred_check
          %p287 = pneg %p91
        $region18: #{deep_autoencoder.1} parent=11 // pred_check_branch
          %289 = sbr.rel (%p287) target = $region20
        $region19: #{deep_autoencoder.1} parent=11 // pred_region
          _
        $region20: #{deep_autoencoder.1} parent=11 // pred_fallthru
          _
        // Predicated region
        $region21: #{deep_autoencoder.1} parent=11 // pred_check
          %p290 = pneg %p112
        $region22: #{deep_autoencoder.1} parent=11 // pred_check_branch
          %292 = sbr.rel (%p290) target = $region24
        $region23: #{deep_autoencoder.1} parent=11 // pred_region
          _
        $region24: #{deep_autoencoder.1} parent=11 // pred_fallthru
          _
        // Predicated region
        $region25: #{deep_autoencoder.1} parent=11 // pred_check
          %p293 = pneg %p133
        $region26: #{deep_autoencoder.1} parent=11 // pred_check_branch
          %295 = sbr.rel (%p293) target = $region28
        $region27: #{deep_autoencoder.1} parent=11 // pred_region
          _
        $region28: #{deep_autoencoder.1} parent=11 // pred_fallthru
          _
        // Predicated region
        $region29: #{deep_autoencoder.1} parent=11 // pred_check
          %p296 = pneg %p154
        $region30: #{deep_autoencoder.1} parent=11 // pred_check_branch
          %298 = sbr.rel (%p296) target = $region32
        $region31: #{deep_autoencoder.1} parent=11 // pred_region
          _
        $region32: #{deep_autoencoder.1} parent=11 // pred_fallthru
          _
        // Predicated region
        $region33: #{deep_autoencoder.1} parent=11 // pred_check
          %p299 = pneg %p175
        $region34: #{deep_autoencoder.1} parent=11 // pred_check_branch
          %301 = sbr.rel (%p299) target = $region36
        $region35: #{deep_autoencoder.1} parent=11 // pred_region
          _
        $region36: #{deep_autoencoder.1} parent=11 // pred_fallthru
          _
        // Predicated region
        $region37: #{deep_autoencoder.1} parent=11 // pred_check
          %p302 = pneg %p196
        $region38: #{deep_autoencoder.1} parent=11 // pred_check_branch
          %304 = sbr.rel (%p302) target = $region40
        $region39: #{deep_autoencoder.1} parent=11 // pred_region
          _
        $region40: #{deep_autoencoder.1} parent=11 // pred_fallthru
          _
        // Predicated region
        $region41: #{deep_autoencoder.1} parent=11 // pred_check
          %p305 = pneg %p217
        $region42: #{deep_autoencoder.1} parent=11 // pred_check_branch
          %307 = sbr.rel (%p305) target = $region44
        $region43: #{deep_autoencoder.1} parent=11 // pred_region
          _
        $region44: #{deep_autoencoder.1} parent=11 // pred_fallthru
          _
      $region12: #{deep_autoencoder.1} parent=5 // pred_fallthru
        _
      %p308 = scmp.lt.s32.totalorder %s23, 2
      // Predicated region
      $region45: #{deep_autoencoder.1} parent=5 // pred_check
        %p309 = pneg %p308
      $region46: #{deep_autoencoder.1} parent=5 // pred_check_branch
        %311 = sbr.rel (%p309) target = $region48
      $region47: #{deep_autoencoder.1} parent=5 // pred_region
        // Predicated region
        $region49: #{deep_autoencoder.1} parent=47 // pred_check
          %p312 = pneg %p43
        $region50: #{deep_autoencoder.1} parent=47 // pred_check_branch
          %314 = sbr.rel (%p312) target = $region52
        $region51: #{deep_autoencoder.1} parent=47 // pred_region
          %s315 = sand.u32 %s33, 1
          %s316 = sand.u32 %s33, 1
          %s317 = smul.addr %s316, 8
          %s318 = scalar_lea.vmem [#allocation2], %s317
          %s319 = smul.addr %s23, 4
          %s320 = scalar_lea.vmem %s0, %s319
          // Predicated region
          $region53: #{deep_autoencoder.1} parent=51 // pred_check
            _
          $region54: #{deep_autoencoder.1} parent=51 // pred_check_branch
            %322 = sbr.rel (0) target = $region56
          $region55: #{deep_autoencoder.1} parent=51 // pred_region
            // Predicated region
            $region57: #{deep_autoencoder.1} parent=55 // pred_check
              _
            $region58: #{deep_autoencoder.1} parent=55 // pred_check_branch
              %324 = sbr.rel target = $region60
            $region59: #{deep_autoencoder.1} parent=55 // pred_region
              // Predicated region
              $region72: #{deep_autoencoder.1} parent=59 // pred_check
                _
              $region73: #{deep_autoencoder.1} parent=59 // pred_check_branch
                %342 = sbr.rel (0) target = $region75
              $region74: #{deep_autoencoder.1} parent=59 // pred_region
                loop: start=0, step=1, limit=1
                $region76: #{deep_autoencoder.1} parent=74 // loop_pre_header
                  _
                $region77: #{deep_autoencoder.1} parent=74 // loop_header
                  %s344 = sphi 0, %s348
                  %p345 = scmp.ge.s32.totalorder %s344, 1
                  %s349 = sphi %s320, %s320
                  %s350 = sphi %s318, %s318
                $region78: #{deep_autoencoder.1} parent=74 // loop_header_branch
                  %347 = sbr.rel (%p345) target = $region82
                $region79: #{deep_autoencoder.1} parent=74 // loop_body
                  _
                $region80: #{deep_autoencoder.1} parent=74 // loop_footer
                  %s348 = sadd.s32 1, %s344
                $region81: #{deep_autoencoder.1} parent=74 // loop_footer_branch
                  %343 = sbr.rel target = $region77
                $region82: #{deep_autoencoder.1} parent=74 // loop_exit
                  _
                %s352 = ssub.s32 16, 1
                loop: start=0, step=1, limit=1
                $region83: #{deep_autoencoder.1} parent=74 // loop_pre_header
                  _
                $region84: #{deep_autoencoder.1} parent=74 // loop_header
                  %s354 = sphi 0, %s358
                  %p355 = scmp.ge.s32.totalorder %s354, 1
                  %s359 = sphi %s320, %s320
                  %s360 = sphi %s318, %s318
                $region85: #{deep_autoencoder.1} parent=74 // loop_header_branch
                  %357 = sbr.rel (%p355) target = $region89
                $region86: #{deep_autoencoder.1} parent=74 // loop_body
                  %v361 = vld [vmem:[%s359] sm:%s352]
                  %362 = vst [vmem:[%s360] sm:%s352] %v361
                  %v363 = vld [vmem:[%s359 + $0x8] sm:%s352]
                  %364 = vst [vmem:[%s360 + $0x4] sm:%s352] %v363
                $region87: #{deep_autoencoder.1} parent=74 // loop_footer
                  %s358 = sadd.s32 1, %s354
                $region88: #{deep_autoencoder.1} parent=74 // loop_footer_branch
                  %353 = sbr.rel target = $region84
                $region89: #{deep_autoencoder.1} parent=74 // loop_exit
                  _
              $region75: #{deep_autoencoder.1} parent=59 // pred_fallthru
                _
            $region60: #{deep_autoencoder.1} parent=55 // pred_fallthru
              _
            // Predicated region
            $region61: #{deep_autoencoder.1} parent=55 // pred_check
              _
            $region62: #{deep_autoencoder.1} parent=55 // pred_check_branch
              %326 = sbr.rel (0) target = $region64
            $region63: #{deep_autoencoder.1} parent=55 // pred_region
              %s328 = ssub.s32 16, 1
              loop: start=0, step=1, limit=1
              $region65: #{deep_autoencoder.1} parent=63 // loop_pre_header
                _
              $region66: #{deep_autoencoder.1} parent=63 // loop_header
                %s330 = sphi 0, %s334
                %p331 = scmp.ge.s32.totalorder %s330, 1
                %s335 = sphi %s320, %s320
                %s336 = sphi %s318, %s318
              $region67: #{deep_autoencoder.1} parent=63 // loop_header_branch
                %333 = sbr.rel (%p331) target = $region71
              $region68: #{deep_autoencoder.1} parent=63 // loop_body
                %v337 = vld [vmem:[%s335] sm:%s328]
                %338 = vst [vmem:[%s336] sm:%s328] %v337
                %v339 = vld [vmem:[%s335 + $0x8] sm:%s328]
                %340 = vst [vmem:[%s336 + $0x4] sm:%s328] %v339
              $region69: #{deep_autoencoder.1} parent=63 // loop_footer
                %s334 = sadd.s32 1, %s330
              $region70: #{deep_autoencoder.1} parent=63 // loop_footer_branch
                %329 = sbr.rel target = $region66
              $region71: #{deep_autoencoder.1} parent=63 // loop_exit
                _
            $region64: #{deep_autoencoder.1} parent=55 // pred_fallthru
              _
          $region56: #{deep_autoencoder.1} parent=51 // pred_fallthru
            _
          %365 = vnop
        $region52: #{deep_autoencoder.1} parent=47 // pred_fallthru
          _
      $region48: #{deep_autoencoder.1} parent=5 // pred_fallthru
        _
      %p366 = scmp.le.s32.totalorder 1, %s23
      %p367 = scmp.lt.s32.totalorder %s23, 3
      %p368 = pnand %p366, %p367
      %p369 = pneg %p368
      // Predicated region
      $region90: #{deep_autoencoder.1} parent=5 // pred_check
        _
      $region91: #{deep_autoencoder.1} parent=5 // pred_check_branch
        %371 = sbr.rel (%p368) target = $region93
      $region92: #{deep_autoencoder.1} parent=5 // pred_region
        %s372 = ssub.s32 %s23, 1
        %s373 = sand.u32 %s36, 1
        %s374 = sand.u32 %s36, 1
        %s375 = smul.addr %s374, 8
        %s376 = scalar_lea.vmem [#allocation2], %s375
        // Predicated region
        $region94: #{deep_autoencoder.1} parent=92 // pred_check
          %p377 = pneg %p49
        $region95: #{deep_autoencoder.1} parent=92 // pred_check_branch
          %379 = sbr.rel (%p377) target = $region97
        $region96: #{deep_autoencoder.1} parent=92 // pred_region
          _
        $region97: #{deep_autoencoder.1} parent=92 // pred_fallthru
          _
        %s380 = sand.u32 %s36, 1
        %s381 = sand.u32 %s36, 1
        %s382 = smul.addr %s381, 8
        %s383 = scalar_lea.vmem [#allocation2], %s382
        %p384 = pneg %p49
        %p385 = pneg %p46
        %p386 = pneg %p70
        %p387 = pneg %p67
        %p388 = pneg %p91
        %p389 = pneg %p88
        %p390 = pneg %p112
        %p391 = pneg %p109
        %p392 = pneg %p133
        %p393 = pneg %p130
        %p394 = pneg %p154
        %p395 = pneg %p151
        %p396 = pneg %p175
        %p397 = pneg %p172
        %p398 = pneg %p196
        %p399 = pneg %p193
        %p400 = pneg %p217
        %p401 = pneg %p214
        %p402 = pneg %p243
        %p403 = pneg %p240
        %s404 = sand.u32 %s230, 1
        %s405 = scalar_lea.sflag [#allocation4], %s404
        %s406 = sand.u32 %s230, 1
        %s407 = smul.addr %s406, 8
        %s408 = scalar_lea.vmem [#allocation3], %s407
        %p409 = pneg %p269
        %p410 = pneg %p266
        %s411 = sand.u32 %s256, 1
        %s412 = scalar_lea.sflag [#allocation6], %s411
        %s413 = sand.u32 %s256, 1
        %s414 = smul.addr %s413, 16
        %s415 = scalar_lea.vmem [#allocation5], %s414
        %v417 = vld [vmem:[%s376] sm:$0xf]
        %v418 = vld [vmem:[%s376 + $0x4] sm:$0xf]
        %v419 = vld [vmem:[%s1] sm:$0xf]
        %v420 = vld [vmem:[%s1 + $0x4] sm:$0xf]
        %v421 = vld [vmem:[%s1 + $0x8] sm:$0xf]
        %v422 = vld [vmem:[%s1 + $0xc] sm:$0xf]
        %v423 = vld [vmem:[%s2] sm:$0xff]
        %v424 = vld [vmem:[%s2 + $0x8] sm:$0xff]
        %v425 = vld [vmem:[%s2 + $0x10] sm:$0xff]
        %v426 = vld [vmem:[%s2 + $0x18] sm:$0xff]
        %428 = vset.pattern.permute.xlu0 0
        %429 = vperm.xlu0 %428, %v423
        %v430 = vpop.permute.xlu0 %429
        %433 = vset.pattern.permute.xlu0 0
        %434 = vperm.xlu0 %433, %v424
        %v435 = vpop.permute.xlu0 %434
        %438 = vset.pattern.permute.xlu0 0
        %439 = vperm.xlu0 %438, %v425
        %v440 = vpop.permute.xlu0 %439
        %443 = vset.pattern.permute.xlu0 0
        %444 = vperm.xlu0 %443, %v426
        %v445 = vpop.permute.xlu0 %444
        %v451 = vunpack.c.l.b16 %v419
        %v452 = vunpack.c.l.b16 %v420
        %v453 = vunpack.c.l.b16 %v421
        %v454 = vunpack.c.l.b16 %v422
        %v455 = vpack.c.b16 %v452, %v451
        %v456 = vpack.c.b16 %v454, %v453
        %v459 = vunpack.c.l.b16 %v417
        %v460 = vunpack.c.l.b16 %v418
        %v461 = vpack.c.b16 %v460, %v459
        %vm463 = vcmask 130048
        %v465 = vsel %vm463, %v455, 0
        %v468 = vsel %vm463, %v456, 0
        %470 = vmatpush.bf16.msra.mxu0 0
        %471 = vmatpush.bf16.msra.mxu0 0
        %472 = vmatpush.bf16.msra.mxu0 0
        %473 = vmatpush.bf16.msra.mxu0 0
        %474 = vmatpush.bf16.msra.mxu0 0
        %475 = vmatpush.bf16.msra.mxu0 0
        %476 = vmatpush.bf16.msra.mxu0 0
        %477 = vmatpush.bf16.msra.mxu0 %v461
        %478 = vmatmul.bf16.gmra.mxu0 %v465
        %v479 = vpop.f32.mrf.mxu0
        %v480 = vadd.f32 %v430, %v479
        %v481 = vpop.f32.mrf.mxu0
        %v482 = vadd.f32 %v435, %v481
        %483 = vmatmul.bf16.gmra.mxu0 %v468
        %v484 = vpop.f32.mrf.mxu0
        %v485 = vadd.f32 %v440, %v484
        %v486 = vpop.f32.mrf.mxu0
        %v487 = vadd.f32 %v445, %v486
        %488 = vdwg.mxu0
        %v489 = vmax.f32 %v480, 0.0
        %v490 = vmax.f32 %v482, 0.0
        %v491 = vmax.f32 %v485, 0.0
        %v492 = vmax.f32 %v487, 0.0
        %v493 = vpack.c.bf16 %v490, %v489
        %v494 = vpack.c.bf16 %v492, %v491
        %v495 = vld [vmem:[%s3] sm:$0xf]
        %v496 = vld [vmem:[%s4] sm:$0xff]
        %498 = vset.pattern.permute.xlu0 0
        %499 = vperm.xlu0 %498, %v496
        %v500 = vpop.permute.xlu0 %499
        %vm502 = vcmask 261120
        %v504 = vsel %vm502, %v495, 0
        %506 = vmatpush.bf16.msra.mxu0 0
        %507 = vmatpush.bf16.msra.mxu0 0
        %508 = vmatpush.bf16.msra.mxu0 0
        %509 = vmatpush.bf16.msra.mxu0 0
        %510 = vmatpush.bf16.msra.mxu0 0
        %511 = vmatpush.bf16.msra.mxu0 0
        %512 = vmatpush.bf16.msra.mxu0 %v494
        %513 = vmatpush.bf16.msra.mxu0 %v493
        %514 = vmatmul.bf16.gmra.mxu0 %v504
        %v515 = vpop.f32.mrf.mxu0
        %v516 = vadd.f32 %v500, %v515
        %v517 = vpop.f32.mrf.mxu0
        %518 = vdwg.mxu0
        %v519 = vmax.f32 %v516, 0.0
        %520 = vst [vmem:[%s408] sm:$0xff] %v519
        %v521 = vpack.c.bf16 %v519, %v519
        %v522 = vld [vmem:[%s5] sm:$0xf]
        %v523 = vld [vmem:[%s5 + $0x4] sm:$0xf]
        %v524 = vld [vmem:[%s5 + $0x8] sm:$0xf]
        %v525 = vld [vmem:[%s5 + $0xc] sm:$0xf]
        %v526 = vld [vmem:[%s6] sm:$0xff]
        %v527 = vld [vmem:[%s6 + $0x8] sm:$0xff]
        %v528 = vld [vmem:[%s6 + $0x10] sm:$0xff]
        %v529 = vld [vmem:[%s6 + $0x18] sm:$0xff]
        %531 = vset.pattern.permute.xlu0 0
        %532 = vperm.xlu0 %531, %v526
        %v533 = vpop.permute.xlu0 %532
        %536 = vset.pattern.permute.xlu0 0
        %537 = vperm.xlu0 %536, %v527
        %v538 = vpop.permute.xlu0 %537
        %541 = vset.pattern.permute.xlu0 0
        %542 = vperm.xlu0 %541, %v528
        %v543 = vpop.permute.xlu0 %542
        %546 = vset.pattern.permute.xlu0 0
        %547 = vperm.xlu0 %546, %v529
        %v548 = vpop.permute.xlu0 %547
        %v554 = vunpack.c.l.b16 %v522
        %v555 = vunpack.c.l.b16 %v523
        %v556 = vunpack.c.l.b16 %v524
        %v557 = vunpack.c.l.b16 %v525
        %v558 = vpack.c.b16 %v555, %v554
        %v559 = vpack.c.b16 %v557, %v556
        %vm560 = vcmask 64512
        %v562 = vsel %vm560, %v558, 0
        %v565 = vsel %vm560, %v559, 0
        %vm567 = vcmask 1043456
        %v569 = vsel %vm567, %v521, 0
        %571 = vmatpush.bf16.msra.mxu0 0
        %572 = vmatpush.bf16.msra.mxu0 0
        %573 = vmatpush.bf16.msra.mxu0 0
        %574 = vmatpush.bf16.msra.mxu0 0
        %575 = vmatpush.bf16.msra.mxu0 0
        %576 = vmatpush.bf16.msra.mxu0 0
        %577 = vmatpush.bf16.msra.mxu0 0
        %578 = vmatpush.bf16.msra.mxu0 %v569
        %579 = vmatmul.bf16.gmra.mxu0 %v562
        %v580 = vpop.f32.mrf.mxu0
        %v581 = vadd.f32 %v533, %v580
        %v582 = vpop.f32.mrf.mxu0
        %v583 = vadd.f32 %v538, %v582
        %584 = vmatmul.bf16.gmra.mxu0 %v565
        %v585 = vpop.f32.mrf.mxu0
        %v586 = vadd.f32 %v543, %v585
        %v587 = vpop.f32.mrf.mxu0
        %v588 = vadd.f32 %v548, %v587
        %589 = vdwg.mxu0
        %v590 = vmax.f32 %v581, 0.0
        %v591 = vmax.f32 %v583, 0.0
        %v592 = vmax.f32 %v586, 0.0
        %v593 = vmax.f32 %v588, 0.0
        %v594 = vpack.c.bf16 %v591, %v590
        %v595 = vpack.c.bf16 %v593, %v592
        %v596 = vld [vmem:[%s7] sm:$0xf]
        %v597 = vld [vmem:[%s7 + $0x4] sm:$0xf]
        %v598 = vld [vmem:[%s8] sm:$0xff]
        %v599 = vld [vmem:[%s8 + $0x8] sm:$0xff]
        %601 = vset.pattern.permute.xlu0 0
        %602 = vperm.xlu0 %601, %v598
        %v603 = vpop.permute.xlu0 %602
        %606 = vset.pattern.permute.xlu0 0
        %607 = vperm.xlu0 %606, %v599
        %v608 = vpop.permute.xlu0 %607
        %v612 = vunpack.c.l.b16 %v596
        %v613 = vunpack.c.l.b16 %v597
        %v614 = vpack.c.b16 %v613, %v612
        %v616 = vsel %vm502, %v614, 0
        %618 = vmatpush.bf16.msra.mxu0 0
        %619 = vmatpush.bf16.msra.mxu0 0
        %620 = vmatpush.bf16.msra.mxu0 0
        %621 = vmatpush.bf16.msra.mxu0 0
        %622 = vmatpush.bf16.msra.mxu0 0
        %623 = vmatpush.bf16.msra.mxu0 0
        %624 = vmatpush.bf16.msra.mxu0 %v595
        %625 = vmatpush.bf16.msra.mxu0 %v594
        %626 = vmatmul.bf16.gmra.mxu0 %v616
        %v627 = vpop.f32.mrf.mxu0
        %v628 = vadd.f32 %v603, %v627
        %v629 = vpop.f32.mrf.mxu0
        %v630 = vadd.f32 %v608, %v629
        %631 = vdwg.mxu0
        %632 = vst [vmem:[%s415] sm:$0xff] %v628
        %633 = vst [vmem:[%s415 + $0x8] sm:$0xff] %v630
        %s634 = sand.u32 %s230, 1
        %s635 = scalar_lea.sflag [#allocation4], %s634
        %s636 = sand.u32 %s230, 1
        %s637 = smul.addr %s636, 8
        %s638 = scalar_lea.vmem [#allocation3], %s637
        %s639 = sand.u32 %s256, 1
        %s640 = scalar_lea.sflag [#allocation6], %s639
        %s641 = sand.u32 %s256, 1
        %s642 = smul.addr %s641, 16
        %s643 = scalar_lea.vmem [#allocation5], %s642
        // Predicated region
        $region98: #{deep_autoencoder.1} parent=92 // pred_check
          %p644 = pneg %p240
        $region99: #{deep_autoencoder.1} parent=92 // pred_check_branch
          %646 = sbr.rel (%p644) target = $region101
        $region100: #{deep_autoencoder.1} parent=92 // pred_region
          %648 = vsyncadd %s635, 0
          %s649 = smul.addr %s28, 8
          %s650 = scalar_lea.hbm %s9, %s649
          %s652 = sshll.u32 %s638, 4
          %s653 = int_to_ptr.vmem [resolvable:$true] %s652
          %s654 = sshll.u32 %s650, 4
          %s655 = int_to_ptr.hbm [resolvable:$true] %s654
          %657 = dma.vmem_to_hbm [thread:$0]  %s653, 128, %s655, %s635
        $region101: #{deep_autoencoder.1} parent=92 // pred_fallthru
          _
        // Predicated region
        $region102: #{deep_autoencoder.1} parent=92 // pred_check
          %p658 = pneg %p266
        $region103: #{deep_autoencoder.1} parent=92 // pred_check_branch
          %660 = sbr.rel (%p658) target = $region105
        $region104: #{deep_autoencoder.1} parent=92 // pred_region
          %662 = vsyncadd %s640, 0
          %s663 = smul.addr %s28, 8
          %s664 = scalar_lea.hbm %s10, %s663
          %s665 = sshll.u32 %s643, 4
          %s666 = int_to_ptr.vmem [resolvable:$true] %s665
          %s667 = sshll.u32 %s664, 4
          %s668 = int_to_ptr.hbm [resolvable:$true] %s667
          %673 = dma.vmem_to_hbm [thread:$0]  %s666, 256, %s668, %s640, 128, 256, 8
        $region105: #{deep_autoencoder.1} parent=92 // pred_fallthru
          _
      $region93: #{deep_autoencoder.1} parent=5 // pred_fallthru
        _
      %p674 = scmp.le.s32.totalorder 2, %s23
      // Predicated region
      $region106: #{deep_autoencoder.1} parent=5 // pred_check
        %p675 = pneg %p674
      $region107: #{deep_autoencoder.1} parent=5 // pred_check_branch
        %677 = sbr.rel (%p675) target = $region109
      $region108: #{deep_autoencoder.1} parent=5 // pred_region
        %s678 = ssub.s32 %s23, 2
        // Predicated region
        $region110: #{deep_autoencoder.1} parent=108 // pred_check
          %p679 = pneg %p246
        $region111: #{deep_autoencoder.1} parent=108 // pred_check_branch
          %681 = sbr.rel (%p679) target = $region113
        $region112: #{deep_autoencoder.1} parent=108 // pred_region
          %s682 = sand.u32 %s231, 1
          %s683 = scalar_lea.sflag [#allocation4], %s682
          %s684 = sand.u32 %s231, 1
          %s685 = smul.addr %s684, 8
          %s686 = scalar_lea.vmem [#allocation3], %s685
          %688 = dma.done %s683, 128
        $region113: #{deep_autoencoder.1} parent=108 // pred_fallthru
          _
        // Predicated region
        $region114: #{deep_autoencoder.1} parent=108 // pred_check
          %p689 = pneg %p272
        $region115: #{deep_autoencoder.1} parent=108 // pred_check_branch
          %691 = sbr.rel (%p689) target = $region117
        $region116: #{deep_autoencoder.1} parent=108 // pred_region
          %s692 = sand.u32 %s257, 1
          %s693 = scalar_lea.sflag [#allocation6], %s692
          %s694 = sand.u32 %s257, 1
          %s695 = smul.addr %s694, 16
          %s696 = scalar_lea.vmem [#allocation5], %s695
          %698 = dma.done %s693, 256
        $region117: #{deep_autoencoder.1} parent=108 // pred_fallthru
          _
      $region109: #{deep_autoencoder.1} parent=5 // pred_fallthru
        _
    $region6: #{deep_autoencoder.1} parent=1 // loop_footer
      %s27 = sadd.s32 1, %s23
    $region7: #{deep_autoencoder.1} parent=1 // loop_footer_branch
      %22 = sbr.rel target = $region3
    $region8: #{deep_autoencoder.1} parent=1 // loop_exit
      _
    %699 = vsyncpa [#allocation4], 1
    %s700 = scalar_lea.sflag [#allocation4], 1
    %701 = vsyncpa %s700, 1
    %702 = vsyncpa [#allocation6], 1
    %s703 = scalar_lea.sflag [#allocation6], 1
    %704 = vsyncpa %s703, 1

// kernel: deep_autoencoder.1
$region0: #{deep_autoencoder.1}
  #allocation0 [shape = 'u32[]', space=smem, size = 0x4, offset = 0x4, fixed_abs, tag = 'smem constant byte address 0x4 - core index']
  #allocation1 [shape = 'u32[72,128]{1,0:T(1,128)}', space=vmem, size = 0x9000, scoped, tag = 'internal scratch']
  %s0 = inlined_call_operand.vmem [shape: bf16[16,256], index: 0, kind: input, shape index: {}]
  %s1 = inlined_call_operand.vmem [shape: bf16[32,16], index: 1, kind: input, shape index: {}]
  %s2 = inlined_call_operand.vmem [shape: f32[32,1], index: 2, kind: input, shape index: {}]
  %s3 = inlined_call_operand.vmem [shape: bf16[8,32], index: 3, kind: input, shape index: {}]
  %s4 = inlined_call_operand.vmem [shape: f32[8,1], index: 4, kind: input, shape index: {}]
  %s5 = inlined_call_operand.vmem [shape: bf16[32,8], index: 5, kind: input, shape index: {}]
  %s6 = inlined_call_operand.vmem [shape: f32[32,1], index: 6, kind: input, shape index: {}]
  %s7 = inlined_call_operand.vmem [shape: bf16[16,32], index: 7, kind: input, shape index: {}]
  %s8 = inlined_call_operand.vmem [shape: f32[16,1], index: 8, kind: input, shape index: {}]
  %s9 = inlined_call_operand.hbm [shape: f32[8,256], index: 9, kind: output, shape index: {0}]
  %s10 = inlined_call_operand.hbm [shape: f32[16,256], index: 10, kind: output, shape index: {1}]
  %11 = xla_tuple %s9, %s10
  %s12 = sld [smem:[#allocation0]]
  $region118: #{deep_autoencoder.1} parent=0
    _
  %s14 = ssub.s32 1, %s12
  %s15 = scalar_select 0, %s14, %s12
  $region1: #{deep_autoencoder.1} parent=0
    #allocation2 [shape = 'u8[8192]{0}', space=vmem, size = 0x2000, scoped, tag = 'input window, operand 0']
    #allocation3 [shape = 'u8[8192]{0}', space=vmem, size = 0x2000, scoped, tag = 'output window, operand 0']
    #allocation4 [shape = 's32[2]{0}', space=sflag, size = 0x8, scoped, tag = 'scoped memory for deep_autoencoder.1']
    #allocation5 [shape = 'u8[16384]{0}', space=vmem, size = 0x4000, scoped, tag = 'output window, operand 1']
    #allocation6 [shape = 's32[2]{0}', space=sflag, size = 0x8, scoped, tag = 'scoped memory for deep_autoencoder.1']
    %16 = vsyncpa [#allocation4], 0
    %s17 = scalar_lea.sflag [#allocation4], 1
    %18 = vsyncpa %s17, 0
    %19 = vsyncpa [#allocation6], 0
    %s20 = scalar_lea.sflag [#allocation6], 1
    %21 = vsyncpa %s20, 0
    loop: start=0, step=1, limit=4
    $region2: #{deep_autoencoder.1} parent=1 // loop_pre_header
      _
    $region3: #{deep_autoencoder.1} parent=1 // loop_header
      %s23 = sphi 0, %s27
      %p24 = scmp.ge.s32.totalorder %s23, 4
      %s33 = sphi 0, %s35
      %s36 = sphi 0, %s33
      %s37 = sphi 0, %s36
      %s53 = sphi 0, %s37
      %s57 = sphi 0, %s57
      %s59 = sphi 0, %s57
      %s60 = sphi 0, %s59
      %s74 = sphi 0, %s60
      %s78 = sphi 0, %s78
      %s80 = sphi 0, %s78
      %s81 = sphi 0, %s80
      %s95 = sphi 0, %s81
      %s99 = sphi 0, %s99
      %s101 = sphi 0, %s99
      %s102 = sphi 0, %s101
      %s116 = sphi 0, %s102
      %s120 = sphi 0, %s120
      %s122 = sphi 0, %s120
      %s123 = sphi 0, %s122
      %s137 = sphi 0, %s123
      %s141 = sphi 0, %s141
      %s143 = sphi 0, %s141
      %s144 = sphi 0, %s143
      %s158 = sphi 0, %s144
      %s162 = sphi 0, %s162
      %s164 = sphi 0, %s162
      %s165 = sphi 0, %s164
      %s179 = sphi 0, %s165
      %s183 = sphi 0, %s183
      %s185 = sphi 0, %s183
      %s186 = sphi 0, %s185
      %s200 = sphi 0, %s186
      %s204 = sphi 0, %s204
      %s206 = sphi 0, %s204
      %s207 = sphi 0, %s206
      %s221 = sphi 0, %s207
      %s227 = sphi 0, %s229
      %s230 = sphi 0, %s227
      %s231 = sphi 0, %s230
      %s247 = sphi 0, %s231
      %s253 = sphi 0, %s255
      %s256 = sphi 0, %s253
      %s257 = sphi 0, %s256
      %s273 = sphi 0, %s257
    $region4: #{deep_autoencoder.1} parent=1 // loop_header_branch
      %26 = sbr.rel (%p24) target = $region8
    $region5: #{deep_autoencoder.1} parent=1 // loop_body
      %s28 = ssub.s32 %s23, 1
      %s29 = ssub.s32 %s23, 2
      %s30 = sadd.s32 %s23, 1
      %s31 = ssub.s32 %s23, %s30
      %p32 = scmp.eq.s32.totalorder %s31, 0
      %s34 = sadd.s32 %s33, 1
      %s35 = scalar_select %p32, %s33, %s34
      %p38 = pneg %p32
      %p39 = scmp.eq.s32.totalorder %s23, 1
      %p40 = por %p38, %p39
      %p41 = scmp.ne.s32.totalorder %s33, %s36
      %p42 = scmp.eq.s32.totalorder %s23, 0
      %p43 = por %p41, %p42
      %p44 = scmp.ne.s32.totalorder %s33, %s36
      %p45 = scmp.eq.s32.totalorder %s28, 1
      %p46 = por %p44, %p45
      %p47 = scmp.ne.s32.totalorder %s36, %s37
      %p48 = scmp.eq.s32.totalorder %s28, 0
      %p49 = por %p47, %p48
      %p50 = scmp.ne.s32.totalorder %s36, %s37
      %p51 = scmp.eq.s32.totalorder %s29, 1
      %p52 = por %p50, %p51
      %p54 = scmp.ne.s32.totalorder %s37, %s53
      %p55 = scmp.eq.s32.totalorder %s29, 0
      %p56 = por %p54, %p55
      %s58 = sadd.s32 %s57, 1
      %p61 = scmp.eq.s32.totalorder %s23, 1
      %p62 = scmp.ne.s32.totalorder %s57, %s59
      %p63 = scmp.eq.s32.totalorder %s23, 0
      %p64 = por %p62, %p63
      %p65 = scmp.ne.s32.totalorder %s57, %s59
      %p66 = scmp.eq.s32.totalorder %s28, 1
      %p67 = por %p65, %p66
      %p68 = scmp.ne.s32.totalorder %s59, %s60
      %p69 = scmp.eq.s32.totalorder %s28, 0
      %p70 = por %p68, %p69
      %p71 = scmp.ne.s32.totalorder %s59, %s60
      %p72 = scmp.eq.s32.totalorder %s29, 1
      %p73 = por %p71, %p72
      %p75 = scmp.ne.s32.totalorder %s60, %s74
      %p76 = scmp.eq.s32.totalorder %s29, 0
      %p77 = por %p75, %p76
      %s79 = sadd.s32 %s78, 1
      %p82 = scmp.eq.s32.totalorder %s23, 1
      %p83 = scmp.ne.s32.totalorder %s78, %s80
      %p84 = scmp.eq.s32.totalorder %s23, 0
      %p85 = por %p83, %p84
      %p86 = scmp.ne.s32.totalorder %s78, %s80
      %p87 = scmp.eq.s32.totalorder %s28, 1
      %p88 = por %p86, %p87
      %p89 = scmp.ne.s32.totalorder %s80, %s81
      %p90 = scmp.eq.s32.totalorder %s28, 0
      %p91 = por %p89, %p90
      %p92 = scmp.ne.s32.totalorder %s80, %s81
      %p93 = scmp.eq.s32.totalorder %s29, 1
      %p94 = por %p92, %p93
      %p96 = scmp.ne.s32.totalorder %s81, %s95
      %p97 = scmp.eq.s32.totalorder %s29, 0
      %p98 = por %p96, %p97
      %s100 = sadd.s32 %s99, 1
      %p103 = scmp.eq.s32.totalorder %s23, 1
      %p104 = scmp.ne.s32.totalorder %s99, %s101
      %p105 = scmp.eq.s32.totalorder %s23, 0
      %p106 = por %p104, %p105
      %p107 = scmp.ne.s32.totalorder %s99, %s101
      %p108 = scmp.eq.s32.totalorder %s28, 1
      %p109 = por %p107, %p108
      %p110 = scmp.ne.s32.totalorder %s101, %s102
      %p111 = scmp.eq.s32.totalorder %s28, 0
      %p112 = por %p110, %p111
      %p113 = scmp.ne.s32.totalorder %s101, %s102
      %p114 = scmp.eq.s32.totalorder %s29, 1
      %p115 = por %p113, %p114
      %p117 = scmp.ne.s32.totalorder %s102, %s116
      %p118 = scmp.eq.s32.totalorder %s29, 0
      %p119 = por %p117, %p118
      %s121 = sadd.s32 %s120, 1
      %p124 = scmp.eq.s32.totalorder %s23, 1
      %p125 = scmp.ne.s32.totalorder %s120, %s122
      %p126 = scmp.eq.s32.totalorder %s23, 0
      %p127 = por %p125, %p126
      %p128 = scmp.ne.s32.totalorder %s120, %s122
      %p129 = scmp.eq.s32.totalorder %s28, 1
      %p130 = por %p128, %p129
      %p131 = scmp.ne.s32.totalorder %s122, %s123
      %p132 = scmp.eq.s32.totalorder %s28, 0
      %p133 = por %p131, %p132
      %p134 = scmp.ne.s32.totalorder %s122, %s123
      %p135 = scmp.eq.s32.totalorder %s29, 1
      %p136 = por %p134, %p135
      %p138 = scmp.ne.s32.totalorder %s123, %s137
      %p139 = scmp.eq.s32.totalorder %s29, 0
      %p140 = por %p138, %p139
      %s142 = sadd.s32 %s141, 1
      %p145 = scmp.eq.s32.totalorder %s23, 1
      %p146 = scmp.ne.s32.totalorder %s141, %s143
      %p147 = scmp.eq.s32.totalorder %s23, 0
      %p148 = por %p146, %p147
      %p149 = scmp.ne.s32.totalorder %s141, %s143
      %p150 = scmp.eq.s32.totalorder %s28, 1
      %p151 = por %p149, %p150
      %p152 = scmp.ne.s32.totalorder %s143, %s144
      %p153 = scmp.eq.s32.totalorder %s28, 0
      %p154 = por %p152, %p153
      %p155 = scmp.ne.s32.totalorder %s143, %s144
      %p156 = scmp.eq.s32.totalorder %s29, 1
      %p157 = por %p155, %p156
      %p159 = scmp.ne.s32.totalorder %s144, %s158
      %p160 = scmp.eq.s32.totalorder %s29, 0
      %p161 = por %p159, %p160
      %s163 = sadd.s32 %s162, 1
      %p166 = scmp.eq.s32.totalorder %s23, 1
      %p167 = scmp.ne.s32.totalorder %s162, %s164
      %p168 = scmp.eq.s32.totalorder %s23, 0
      %p169 = por %p167, %p168
      %p170 = scmp.ne.s32.totalorder %s162, %s164
      %p171 = scmp.eq.s32.totalorder %s28, 1
      %p172 = por %p170, %p171
      %p173 = scmp.ne.s32.totalorder %s164, %s165
      %p174 = scmp.eq.s32.totalorder %s28, 0
      %p175 = por %p173, %p174
      %p176 = scmp.ne.s32.totalorder %s164, %s165
      %p177 = scmp.eq.s32.totalorder %s29, 1
      %p178 = por %p176, %p177
      %p180 = scmp.ne.s32.totalorder %s165, %s179
      %p181 = scmp.eq.s32.totalorder %s29, 0
      %p182 = por %p180, %p181
      %s184 = sadd.s32 %s183, 1
      %p187 = scmp.eq.s32.totalorder %s23, 1
      %p188 = scmp.ne.s32.totalorder %s183, %s185
      %p189 = scmp.eq.s32.totalorder %s23, 0
      %p190 = por %p188, %p189
      %p191 = scmp.ne.s32.totalorder %s183, %s185
      %p192 = scmp.eq.s32.totalorder %s28, 1
      %p193 = por %p191, %p192
      %p194 = scmp.ne.s32.totalorder %s185, %s186
      %p195 = scmp.eq.s32.totalorder %s28, 0
      %p196 = por %p194, %p195
      %p197 = scmp.ne.s32.totalorder %s185, %s186
      %p198 = scmp.eq.s32.totalorder %s29, 1
      %p199 = por %p197, %p198
      %p201 = scmp.ne.s32.totalorder %s186, %s200
      %p202 = scmp.eq.s32.totalorder %s29, 0
      %p203 = por %p201, %p202
      %s205 = sadd.s32 %s204, 1
      %p208 = scmp.eq.s32.totalorder %s23, 1
      %p209 = scmp.ne.s32.totalorder %s204, %s206
      %p210 = scmp.eq.s32.totalorder %s23, 0
      %p211 = por %p209, %p210
      %p212 = scmp.ne.s32.totalorder %s204, %s206
      %p213 = scmp.eq.s32.totalorder %s28, 1
      %p214 = por %p212, %p213
      %p215 = scmp.ne.s32.totalorder %s206, %s207
      %p216 = scmp.eq.s32.totalorder %s28, 0
      %p217 = por %p215, %p216
      %p218 = scmp.ne.s32.totalorder %s206, %s207
      %p219 = scmp.eq.s32.totalorder %s29, 1
      %p220 = por %p218, %p219
      %p222 = scmp.ne.s32.totalorder %s207, %s221
      %p223 = scmp.eq.s32.totalorder %s29, 0
      %p224 = por %p222, %p223
      %s225 = ssub.s32 %s23, %s30
      %p226 = scmp.eq.s32.totalorder %s225, 0
      %s228 = sadd.s32 %s227, 1
      %s229 = scalar_select %p226, %s227, %s228
      %p232 = pneg %p226
      %p233 = scmp.eq.s32.totalorder %s23, 1
      %p234 = por %p232, %p233
      %p235 = scmp.ne.s32.totalorder %s227, %s230
      %p236 = scmp.eq.s32.totalorder %s23, 0
      %p237 = por %p235, %p236
      %p238 = scmp.ne.s32.totalorder %s227, %s230
      %p239 = scmp.eq.s32.totalorder %s28, 1
      %p240 = por %p238, %p239
      %p241 = scmp.ne.s32.totalorder %s230, %s231
      %p242 = scmp.eq.s32.totalorder %s28, 0
      %p243 = por %p241, %p242
      %p244 = scmp.ne.s32.totalorder %s230, %s231
      %p245 = scmp.eq.s32.totalorder %s29, 1
      %p246 = por %p244, %p245
      %p248 = scmp.ne.s32.totalorder %s231, %s247
      %p249 = scmp.eq.s32.totalorder %s29, 0
      %p250 = por %p248, %p249
      %s251 = ssub.s32 %s23, %s30
      %p252 = scmp.eq.s32.totalorder %s251, 0
      %s254 = sadd.s32 %s253, 1
      %s255 = scalar_select %p252, %s253, %s254
      %p258 = pneg %p252
      %p259 = scmp.eq.s32.totalorder %s23, 1
      %p260 = por %p258, %p259
      %p261 = scmp.ne.s32.totalorder %s253, %s256
      %p262 = scmp.eq.s32.totalorder %s23, 0
      %p263 = por %p261, %p262
      %p264 = scmp.ne.s32.totalorder %s253, %s256
      %p265 = scmp.eq.s32.totalorder %s28, 1
      %p266 = por %p264, %p265
      %p267 = scmp.ne.s32.totalorder %s256, %s257
      %p268 = scmp.eq.s32.totalorder %s28, 0
      %p269 = por %p267, %p268
      %p270 = scmp.ne.s32.totalorder %s256, %s257
      %p271 = scmp.eq.s32.totalorder %s29, 1
      %p272 = por %p270, %p271
      %p274 = scmp.ne.s32.totalorder %s257, %s273
      %p275 = scmp.eq.s32.totalorder %s29, 0
      %p276 = por %p274, %p275
      %p277 = scmp.le.s32.totalorder 1, %s23
      %p278 = scmp.lt.s32.totalorder %s23, 3
      %p279 = pnand %p277, %p278
      %p280 = pneg %p279
      // Predicated region
      $region9: #{deep_autoencoder.1} parent=5 // pred_check
        _
      $region10: #{deep_autoencoder.1} parent=5 // pred_check_branch
        %282 = sbr.rel (%p279) target = $region12
      $region11: #{deep_autoencoder.1} parent=5 // pred_region
        %s283 = ssub.s32 %s23, 1
        // Predicated region
        $region13: #{deep_autoencoder.1} parent=11 // pred_check
          %p284 = pneg %p70
        $region14: #{deep_autoencoder.1} parent=11 // pred_check_branch
          %286 = sbr.rel (%p284) target = $region16
        $region15: #{deep_autoencoder.1} parent=11 // pred_region
          _
        $region16: #{deep_autoencoder.1} parent=11 // pred_fallthru
          _
        // Predicated region
        $region17: #{deep_autoencoder.1} parent=11 // pred_check
          %p287 = pneg %p91
        $region18: #{deep_autoencoder.1} parent=11 // pred_check_branch
          %289 = sbr.rel (%p287) target = $region20
        $region19: #{deep_autoencoder.1} parent=11 // pred_region
          _
        $region20: #{deep_autoencoder.1} parent=11 // pred_fallthru
          _
        // Predicated region
        $region21: #{deep_autoencoder.1} parent=11 // pred_check
          %p290 = pneg %p112
        $region22: #{deep_autoencoder.1} parent=11 // pred_check_branch
          %292 = sbr.rel (%p290) target = $region24
        $region23: #{deep_autoencoder.1} parent=11 // pred_region
          _
        $region24: #{deep_autoencoder.1} parent=11 // pred_fallthru
          _
        // Predicated region
        $region25: #{deep_autoencoder.1} parent=11 // pred_check
          %p293 = pneg %p133
        $region26: #{deep_autoencoder.1} parent=11 // pred_check_branch
          %295 = sbr.rel (%p293) target = $region28
        $region27: #{deep_autoencoder.1} parent=11 // pred_region
          _
        $region28: #{deep_autoencoder.1} parent=11 // pred_fallthru
          _
        // Predicated region
        $region29: #{deep_autoencoder.1} parent=11 // pred_check
          %p296 = pneg %p154
        $region30: #{deep_autoencoder.1} parent=11 // pred_check_branch
          %298 = sbr.rel (%p296) target = $region32
        $region31: #{deep_autoencoder.1} parent=11 // pred_region
          _
        $region32: #{deep_autoencoder.1} parent=11 // pred_fallthru
          _
        // Predicated region
        $region33: #{deep_autoencoder.1} parent=11 // pred_check
          %p299 = pneg %p175
        $region34: #{deep_autoencoder.1} parent=11 // pred_check_branch
          %301 = sbr.rel (%p299) target = $region36
        $region35: #{deep_autoencoder.1} parent=11 // pred_region
          _
        $region36: #{deep_autoencoder.1} parent=11 // pred_fallthru
          _
        // Predicated region
        $region37: #{deep_autoencoder.1} parent=11 // pred_check
          %p302 = pneg %p196
        $region38: #{deep_autoencoder.1} parent=11 // pred_check_branch
          %304 = sbr.rel (%p302) target = $region40
        $region39: #{deep_autoencoder.1} parent=11 // pred_region
          _
        $region40: #{deep_autoencoder.1} parent=11 // pred_fallthru
          _
        // Predicated region
        $region41: #{deep_autoencoder.1} parent=11 // pred_check
          %p305 = pneg %p217
        $region42: #{deep_autoencoder.1} parent=11 // pred_check_branch
          %307 = sbr.rel (%p305) target = $region44
        $region43: #{deep_autoencoder.1} parent=11 // pred_region
          _
        $region44: #{deep_autoencoder.1} parent=11 // pred_fallthru
          _
      $region12: #{deep_autoencoder.1} parent=5 // pred_fallthru
        _
      %p308 = scmp.lt.s32.totalorder %s23, 2
      // Predicated region
      $region45: #{deep_autoencoder.1} parent=5 // pred_check
        %p309 = pneg %p308
      $region46: #{deep_autoencoder.1} parent=5 // pred_check_branch
        %311 = sbr.rel (%p309) target = $region48
      $region47: #{deep_autoencoder.1} parent=5 // pred_region
        // Predicated region
        $region49: #{deep_autoencoder.1} parent=47 // pred_check
          %p312 = pneg %p43
        $region50: #{deep_autoencoder.1} parent=47 // pred_check_branch
          %314 = sbr.rel (%p312) target = $region52
        $region51: #{deep_autoencoder.1} parent=47 // pred_region
          %s315 = sand.u32 %s33, 1
          %s316 = sand.u32 %s33, 1
          %s317 = smul.addr %s316, 8
          %s318 = scalar_lea.vmem [#allocation2], %s317
          %s319 = smul.addr %s23, 4
          %s320 = scalar_lea.vmem %s0, %s319
          // Predicated region
          $region53: #{deep_autoencoder.1} parent=51 // pred_check
            _
          $region54: #{deep_autoencoder.1} parent=51 // pred_check_branch
            %322 = sbr.rel (0) target = $region56
          $region55: #{deep_autoencoder.1} parent=51 // pred_region
            // Predicated region
            $region57: #{deep_autoencoder.1} parent=55 // pred_check
              _
            $region58: #{deep_autoencoder.1} parent=55 // pred_check_branch
              %324 = sbr.rel target = $region60
            $region59: #{deep_autoencoder.1} parent=55 // pred_region
              // Predicated region
              $region72: #{deep_autoencoder.1} parent=59 // pred_check
                _
              $region73: #{deep_autoencoder.1} parent=59 // pred_check_branch
                %342 = sbr.rel (0) target = $region75
              $region74: #{deep_autoencoder.1} parent=59 // pred_region
                loop: start=0, step=1, limit=1
                $region76: #{deep_autoencoder.1} parent=74 // loop_pre_header
                  _
                $region77: #{deep_autoencoder.1} parent=74 // loop_header
                  %s344 = sphi 0, %s348
                  %p345 = scmp.ge.s32.totalorder %s344, 1
                  %s349 = sphi %s320, %s320
                  %s350 = sphi %s318, %s318
                $region78: #{deep_autoencoder.1} parent=74 // loop_header_branch
                  %347 = sbr.rel (%p345) target = $region82
                $region79: #{deep_autoencoder.1} parent=74 // loop_body
                  _
                $region80: #{deep_autoencoder.1} parent=74 // loop_footer
                  %s348 = sadd.s32 1, %s344
                $region81: #{deep_autoencoder.1} parent=74 // loop_footer_branch
                  %343 = sbr.rel target = $region77
                $region82: #{deep_autoencoder.1} parent=74 // loop_exit
                  _
                %s352 = ssub.s32 16, 1
                loop: start=0, step=1, limit=1
                $region83: #{deep_autoencoder.1} parent=74 // loop_pre_header
                  _
                $region84: #{deep_autoencoder.1} parent=74 // loop_header
                  %s354 = sphi 0, %s358
                  %p355 = scmp.ge.s32.totalorder %s354, 1
                  %s359 = sphi %s320, %s320
                  %s360 = sphi %s318, %s318
                $region85: #{deep_autoencoder.1} parent=74 // loop_header_branch
                  %357 = sbr.rel (%p355) target = $region89
                $region86: #{deep_autoencoder.1} parent=74 // loop_body
                  %v361 = vld [vmem:[%s359] sm:%s352]
                  %362 = vst [vmem:[%s360] sm:%s352] %v361
                  %v363 = vld [vmem:[%s359 + $0x8] sm:%s352]
                  %364 = vst [vmem:[%s360 + $0x4] sm:%s352] %v363
                $region87: #{deep_autoencoder.1} parent=74 // loop_footer
                  %s358 = sadd.s32 1, %s354
                $region88: #{deep_autoencoder.1} parent=74 // loop_footer_branch
                  %353 = sbr.rel target = $region84
                $region89: #{deep_autoencoder.1} parent=74 // loop_exit
                  _
              $region75: #{deep_autoencoder.1} parent=59 // pred_fallthru
                _
            $region60: #{deep_autoencoder.1} parent=55 // pred_fallthru
              _
            // Predicated region
            $region61: #{deep_autoencoder.1} parent=55 // pred_check
              _
            $region62: #{deep_autoencoder.1} parent=55 // pred_check_branch
              %326 = sbr.rel (0) target = $region64
            $region63: #{deep_autoencoder.1} parent=55 // pred_region
              %s328 = ssub.s32 16, 1
              loop: start=0, step=1, limit=1
              $region65: #{deep_autoencoder.1} parent=63 // loop_pre_header
                _
              $region66: #{deep_autoencoder.1} parent=63 // loop_header
                %s330 = sphi 0, %s334
                %p331 = scmp.ge.s32.totalorder %s330, 1
                %s335 = sphi %s320, %s320
                %s336 = sphi %s318, %s318
              $region67: #{deep_autoencoder.1} parent=63 // loop_header_branch
                %333 = sbr.rel (%p331) target = $region71
              $region68: #{deep_autoencoder.1} parent=63 // loop_body
                %v337 = vld [vmem:[%s335] sm:%s328]
                %338 = vst [vmem:[%s336] sm:%s328] %v337
                %v339 = vld [vmem:[%s335 + $0x8] sm:%s328]
                %340 = vst [vmem:[%s336 + $0x4] sm:%s328] %v339
              $region69: #{deep_autoencoder.1} parent=63 // loop_footer
                %s334 = sadd.s32 1, %s330
              $region70: #{deep_autoencoder.1} parent=63 // loop_footer_branch
                %329 = sbr.rel target = $region66
              $region71: #{deep_autoencoder.1} parent=63 // loop_exit
                _
            $region64: #{deep_autoencoder.1} parent=55 // pred_fallthru
              _
          $region56: #{deep_autoencoder.1} parent=51 // pred_fallthru
            _
          %365 = vnop
        $region52: #{deep_autoencoder.1} parent=47 // pred_fallthru
          _
      $region48: #{deep_autoencoder.1} parent=5 // pred_fallthru
        _
      %p366 = scmp.le.s32.totalorder 1, %s23
      %p367 = scmp.lt.s32.totalorder %s23, 3
      %p368 = pnand %p366, %p367
      %p369 = pneg %p368
      // Predicated region
      $region90: #{deep_autoencoder.1} parent=5 // pred_check
        _
      $region91: #{deep_autoencoder.1} parent=5 // pred_check_branch
        %371 = sbr.rel (%p368) target = $region93
      $region92: #{deep_autoencoder.1} parent=5 // pred_region
        %s372 = ssub.s32 %s23, 1
        %s373 = sand.u32 %s36, 1
        %s374 = sand.u32 %s36, 1
        %s375 = smul.addr %s374, 8
        %s376 = scalar_lea.vmem [#allocation2], %s375
        // Predicated region
        $region94: #{deep_autoencoder.1} parent=92 // pred_check
          %p377 = pneg %p49
        $region95: #{deep_autoencoder.1} parent=92 // pred_check_branch
          %379 = sbr.rel (%p377) target = $region97
        $region96: #{deep_autoencoder.1} parent=92 // pred_region
          _
        $region97: #{deep_autoencoder.1} parent=92 // pred_fallthru
          _
        %s380 = sand.u32 %s36, 1
        %s381 = sand.u32 %s36, 1
        %s382 = smul.addr %s381, 8
        %s383 = scalar_lea.vmem [#allocation2], %s382
        %p384 = pneg %p49
        %p385 = pneg %p46
        %p386 = pneg %p70
        %p387 = pneg %p67
        %p388 = pneg %p91
        %p389 = pneg %p88
        %p390 = pneg %p112
        %p391 = pneg %p109
        %p392 = pneg %p133
        %p393 = pneg %p130
        %p394 = pneg %p154
        %p395 = pneg %p151
        %p396 = pneg %p175
        %p397 = pneg %p172
        %p398 = pneg %p196
        %p399 = pneg %p193
        %p400 = pneg %p217
        %p401 = pneg %p214
        %p402 = pneg %p243
        %p403 = pneg %p240
        %s404 = sand.u32 %s230, 1
        %s405 = scalar_lea.sflag [#allocation4], %s404
        %s406 = sand.u32 %s230, 1
        %s407 = smul.addr %s406, 8
        %s408 = scalar_lea.vmem [#allocation3], %s407
        %p409 = pneg %p269
        %p410 = pneg %p266
        %s411 = sand.u32 %s256, 1
        %s412 = scalar_lea.sflag [#allocation6], %s411
        %s413 = sand.u32 %s256, 1
        %s414 = smul.addr %s413, 16
        %s415 = scalar_lea.vmem [#allocation5], %s414
        %v417 = vld [vmem:[%s376] sm:$0xf]
        %v418 = vld [vmem:[%s376 + $0x4] sm:$0xf]
        %v419 = vld [vmem:[%s1] sm:$0xf]
        %v420 = vld [vmem:[%s1 + $0x4] sm:$0xf]
        %v421 = vld [vmem:[%s1 + $0x8] sm:$0xf]
        %v422 = vld [vmem:[%s1 + $0xc] sm:$0xf]
        %v423 = vld [vmem:[%s2] sm:$0xff]
        %v424 = vld [vmem:[%s2 + $0x8] sm:$0xff]
        %v425 = vld [vmem:[%s2 + $0x10] sm:$0xff]
        %v426 = vld [vmem:[%s2 + $0x18] sm:$0xff]
        %428 = vset.pattern.permute.xlu0 0
        %429 = vperm.xlu0 %428, %v423
        %v430 = vpop.permute.xlu0 %429
        %433 = vset.pattern.permute.xlu0 0
        %434 = vperm.xlu0 %433, %v424
        %v435 = vpop.permute.xlu0 %434
        %438 = vset.pattern.permute.xlu0 0
        %439 = vperm.xlu0 %438, %v425
        %v440 = vpop.permute.xlu0 %439
        %443 = vset.pattern.permute.xlu0 0
        %444 = vperm.xlu0 %443, %v426
        %v445 = vpop.permute.xlu0 %444
        %v451 = vunpack.c.l.b16 %v419
        %v452 = vunpack.c.l.b16 %v420
        %v453 = vunpack.c.l.b16 %v421
        %v454 = vunpack.c.l.b16 %v422
        %v455 = vpack.c.b16 %v452, %v451
        %v456 = vpack.c.b16 %v454, %v453
        %v459 = vunpack.c.l.b16 %v417
        %v460 = vunpack.c.l.b16 %v418
        %v461 = vpack.c.b16 %v460, %v459
        %vm463 = vcmask 130048
        %v465 = vsel %vm463, %v455, 0
        %v468 = vsel %vm463, %v456, 0
        %470 = vmatpush.bf16.msra.mxu0 0
        %471 = vmatpush.bf16.msra.mxu0 0
        %472 = vmatpush.bf16.msra.mxu0 0
        %473 = vmatpush.bf16.msra.mxu0 0
        %474 = vmatpush.bf16.msra.mxu0 0
        %475 = vmatpush.bf16.msra.mxu0 0
        %476 = vmatpush.bf16.msra.mxu0 0
        %477 = vmatpush.bf16.msra.mxu0 %v461
        %478 = vmatmul.bf16.gmra.mxu0 %v465
        %v479 = vpop.f32.mrf.mxu0
        %v480 = vadd.f32 %v430, %v479
        %v481 = vpop.f32.mrf.mxu0
        %v482 = vadd.f32 %v435, %v481
        %483 = vmatmul.bf16.gmra.mxu0 %v468
        %v484 = vpop.f32.mrf.mxu0
        %v485 = vadd.f32 %v440, %v484
        %v486 = vpop.f32.mrf.mxu0
        %v487 = vadd.f32 %v445, %v486
        %488 = vdwg.mxu0
        %v489 = vmax.f32 %v480, 0.0
        %v490 = vmax.f32 %v482, 0.0
        %v491 = vmax.f32 %v485, 0.0
        %v492 = vmax.f32 %v487, 0.0
        %v493 = vpack.c.bf16 %v490, %v489
        %v494 = vpack.c.bf16 %v492, %v491
        %v495 = vld [vmem:[%s3] sm:$0xf]
        %v496 = vld [vmem:[%s4] sm:$0xff]
        %498 = vset.pattern.permute.xlu0 0
        %499 = vperm.xlu0 %498, %v496
        %v500 = vpop.permute.xlu0 %499
        %vm502 = vcmask 261120
        %v504 = vsel %vm502, %v495, 0
        %506 = vmatpush.bf16.msra.mxu0 0
        %507 = vmatpush.bf16.msra.mxu0 0
        %508 = vmatpush.bf16.msra.mxu0 0
        %509 = vmatpush.bf16.msra.mxu0 0
        %510 = vmatpush.bf16.msra.mxu0 0
        %511 = vmatpush.bf16.msra.mxu0 0
        %512 = vmatpush.bf16.msra.mxu0 %v494
        %513 = vmatpush.bf16.msra.mxu0 %v493
        %514 = vmatmul.bf16.gmra.mxu0 %v504
        %v515 = vpop.f32.mrf.mxu0
        %v516 = vadd.f32 %v500, %v515
        %v517 = vpop.f32.mrf.mxu0
        %518 = vdwg.mxu0
        %v519 = vmax.f32 %v516, 0.0
        %520 = vst [vmem:[%s408] sm:$0xff] %v519
        %v521 = vpack.c.bf16 %v519, %v519
        %v522 = vld [vmem:[%s5] sm:$0xf]
        %v523 = vld [vmem:[%s5 + $0x4] sm:$0xf]
        %v524 = vld [vmem:[%s5 + $0x8] sm:$0xf]
        %v525 = vld [vmem:[%s5 + $0xc] sm:$0xf]
        %v526 = vld [vmem:[%s6] sm:$0xff]
        %v527 = vld [vmem:[%s6 + $0x8] sm:$0xff]
        %v528 = vld [vmem:[%s6 + $0x10] sm:$0xff]
        %v529 = vld [vmem:[%s6 + $0x18] sm:$0xff]
        %531 = vset.pattern.permute.xlu0 0
        %532 = vperm.xlu0 %531, %v526
        %v533 = vpop.permute.xlu0 %532
        %536 = vset.pattern.permute.xlu0 0
        %537 = vperm.xlu0 %536, %v527
        %v538 = vpop.permute.xlu0 %537
        %541 = vset.pattern.permute.xlu0 0
        %542 = vperm.xlu0 %541, %v528
        %v543 = vpop.permute.xlu0 %542
        %546 = vset.pattern.permute.xlu0 0
        %547 = vperm.xlu0 %546, %v529
        %v548 = vpop.permute.xlu0 %547
        %v554 = vunpack.c.l.b16 %v522
        %v555 = vunpack.c.l.b16 %v523
        %v556 = vunpack.c.l.b16 %v524
        %v557 = vunpack.c.l.b16 %v525
        %v558 = vpack.c.b16 %v555, %v554
        %v559 = vpack.c.b16 %v557, %v556
        %vm560 = vcmask 64512
        %v562 = vsel %vm560, %v558, 0
        %v565 = vsel %vm560, %v559, 0
        %vm567 = vcmask 1043456
        %v569 = vsel %vm567, %v521, 0
        %571 = vmatpush.bf16.msra.mxu0 0
        %572 = vmatpush.bf16.msra.mxu0 0
        %573 = vmatpush.bf16.msra.mxu0 0
        %574 = vmatpush.bf16.msra.mxu0 0
        %575 = vmatpush.bf16.msra.mxu0 0
        %576 = vmatpush.bf16.msra.mxu0 0
        %577 = vmatpush.bf16.msra.mxu0 0
        %578 = vmatpush.bf16.msra.mxu0 %v569
        %579 = vmatmul.bf16.gmra.mxu0 %v562
        %v580 = vpop.f32.mrf.mxu0
        %v581 = vadd.f32 %v533, %v580
        %v582 = vpop.f32.mrf.mxu0
        %v583 = vadd.f32 %v538, %v582
        %584 = vmatmul.bf16.gmra.mxu0 %v565
        %v585 = vpop.f32.mrf.mxu0
        %v586 = vadd.f32 %v543, %v585
        %v587 = vpop.f32.mrf.mxu0
        %v588 = vadd.f32 %v548, %v587
        %589 = vdwg.mxu0
        %v590 = vmax.f32 %v581, 0.0
        %v591 = vmax.f32 %v583, 0.0
        %v592 = vmax.f32 %v586, 0.0
        %v593 = vmax.f32 %v588, 0.0
        %v594 = vpack.c.bf16 %v591, %v590
        %v595 = vpack.c.bf16 %v593, %v592
        %v596 = vld [vmem:[%s7] sm:$0xf]
        %v597 = vld [vmem:[%s7 + $0x4] sm:$0xf]
        %v598 = vld [vmem:[%s8] sm:$0xff]
        %v599 = vld [vmem:[%s8 + $0x8] sm:$0xff]
        %601 = vset.pattern.permute.xlu0 0
        %602 = vperm.xlu0 %601, %v598
        %v603 = vpop.permute.xlu0 %602
        %606 = vset.pattern.permute.xlu0 0
        %607 = vperm.xlu0 %606, %v599
        %v608 = vpop.permute.xlu0 %607
        %v612 = vunpack.c.l.b16 %v596
        %v613 = vunpack.c.l.b16 %v597
        %v614 = vpack.c.b16 %v613, %v612
        %v616 = vsel %vm502, %v614, 0
        %618 = vmatpush.bf16.msra.mxu0 0
        %619 = vmatpush.bf16.msra.mxu0 0
        %620 = vmatpush.bf16.msra.mxu0 0
        %621 = vmatpush.bf16.msra.mxu0 0
        %622 = vmatpush.bf16.msra.mxu0 0
        %623 = vmatpush.bf16.msra.mxu0 0
        %624 = vmatpush.bf16.msra.mxu0 %v595
        %625 = vmatpush.bf16.msra.mxu0 %v594
        %626 = vmatmul.bf16.gmra.mxu0 %v616
        %v627 = vpop.f32.mrf.mxu0
        %v628 = vadd.f32 %v603, %v627
        %v629 = vpop.f32.mrf.mxu0
        %v630 = vadd.f32 %v608, %v629
        %631 = vdwg.mxu0
        %632 = vst [vmem:[%s415] sm:$0xff] %v628
        %633 = vst [vmem:[%s415 + $0x8] sm:$0xff] %v630
        %s634 = sand.u32 %s230, 1
        %s635 = scalar_lea.sflag [#allocation4], %s634
        %s636 = sand.u32 %s230, 1
        %s637 = smul.addr %s636, 8
        %s638 = scalar_lea.vmem [#allocation3], %s637
        %s639 = sand.u32 %s256, 1
        %s640 = scalar_lea.sflag [#allocation6], %s639
        %s641 = sand.u32 %s256, 1
        %s642 = smul.addr %s641, 16
        %s643 = scalar_lea.vmem [#allocation5], %s642
        // Predicated region
        $region98: #{deep_autoencoder.1} parent=92 // pred_check
          %p644 = pneg %p240
        $region99: #{deep_autoencoder.1} parent=92 // pred_check_branch
          %646 = sbr.rel (%p644) target = $region101
        $region100: #{deep_autoencoder.1} parent=92 // pred_region
          %648 = vsyncadd %s635, 0
          %s649 = smul.addr %s28, 8
          %s650 = scalar_lea.hbm %s9, %s649
          %s652 = sshll.u32 %s638, 4
          %s653 = int_to_ptr.vmem [resolvable:$true] %s652
          %s654 = sshll.u32 %s650, 4
          %s655 = int_to_ptr.hbm [resolvable:$true] %s654
          %657 = dma.vmem_to_hbm [thread:$0]  %s653, 128, %s655, %s635
        $region101: #{deep_autoencoder.1} parent=92 // pred_fallthru
          _
        // Predicated region
        $region102: #{deep_autoencoder.1} parent=92 // pred_check
          %p658 = pneg %p266
        $region103: #{deep_autoencoder.1} parent=92 // pred_check_branch
          %660 = sbr.rel (%p658) target = $region105
        $region104: #{deep_autoencoder.1} parent=92 // pred_region
          %662 = vsyncadd %s640, 0
          %s663 = smul.addr %s28, 8
          %s664 = scalar_lea.hbm %s10, %s663
          %s665 = sshll.u32 %s643, 4
          %s666 = int_to_ptr.vmem [resolvable:$true] %s665
          %s667 = sshll.u32 %s664, 4
          %s668 = int_to_ptr.hbm [resolvable:$true] %s667
          %673 = dma.vmem_to_hbm [thread:$0]  %s666, 256, %s668, %s640, 128, 256, 8
        $region105: #{deep_autoencoder.1} parent=92 // pred_fallthru
          _
      $region93: #{deep_autoencoder.1} parent=5 // pred_fallthru
        _
      %p674 = scmp.le.s32.totalorder 2, %s23
      // Predicated region
      $region106: #{deep_autoencoder.1} parent=5 // pred_check
        %p675 = pneg %p674
      $region107: #{deep_autoencoder.1} parent=5 // pred_check_branch
        %677 = sbr.rel (%p675) target = $region109
      $region108: #{deep_autoencoder.1} parent=5 // pred_region
        %s678 = ssub.s32 %s23, 2
        // Predicated region
        $region110: #{deep_autoencoder.1} parent=108 // pred_check
          %p679 = pneg %p246
        $region111: #{deep_autoencoder.1} parent=108 // pred_check_branch
          %681 = sbr.rel (%p679) target = $region113
        $region112: #{deep_autoencoder.1} parent=108 // pred_region
          %s682 = sand.u32 %s231, 1
          %s683 = scalar_lea.sflag [#allocation4], %s682
          %s684 = sand.u32 %s231, 1
          %s685 = smul.addr %s684, 8
          %s686 = scalar_lea.vmem [#allocation3], %s685
          %688 = dma.done %s683, 128
        $region113: #{deep_autoencoder.1} parent=108 // pred_fallthru
          _
        // Predicated region
        $region114: #{deep_autoencoder.1} parent=108 // pred_check
          %p689 = pneg %p272
        $region115: #{deep_autoencoder.1} parent=108 // pred_check_branch
          %691 = sbr.rel (%p689) target = $region117
        $region116: #{deep_autoencoder.1} parent=108 // pred_region
          %s692 = sand.u32 %s257, 1
          %s693 = scalar_lea.sflag [#allocation6], %s692
          %s694 = sand.u32 %s257, 1
          %s695 = smul.addr %s694, 16
          %s696 = scalar_lea.vmem [#allocation5], %s695
          %698 = dma.done %s693, 256
        $region117: #{deep_autoencoder.1} parent=108 // pred_fallthru
          _
      $region109: #{deep_autoencoder.1} parent=5 // pred_fallthru
        _
    $region6: #{deep_autoencoder.1} parent=1 // loop_footer
      %s27 = sadd.s32 1, %s23
    $region7: #{deep_autoencoder.1} parent=1 // loop_footer_branch
      %22 = sbr.rel target = $region3
    $region8: #{deep_autoencoder.1} parent=1 // loop_exit
      _
    %699 = vsyncpa [#allocation4], 1
    %s700 = scalar_lea.sflag [#allocation4], 1
    %701 = vsyncpa %s700, 1
    %702 = vsyncpa [#allocation6], 1
    %s703 = scalar_lea.sflag [#allocation6], 1
    %704 = vsyncpa %s703, 1

</llo_original>
